<compile_context>
chip_gen: v7x
topology: tpu7x:2x2x1
jax: 0.10.0
libtpu: 0.0.40
codegen_flags: <defaults>
</compile_context>

<pallas_src>
import functools
import math

import jax
import jax.numpy as jnp
from jax.experimental import pallas as pl
from jax.experimental.pallas import tpu as pltpu

# ----------------------------- small BERT config ------------------------------
VOCAB = 50
MAX_POS = 32
TYPE_VOCAB = 2
HIDDEN = 32
N_HEADS = 2
HEAD_DIM = HIDDEN // N_HEADS
INTERMEDIATE = 64
N_LAYERS = 2
LN_EPS = 1e-12

# --------------------------- parameter-slab layout -----------------------------
# One lane-dense f32 slab [SLAB_ROWS, 128]; every matrix starts at an 8-aligned row,
# columns always start at lane 0.  Offsets are module-level Python ints so the packer
# and the kernel agree at trace time.
SLAB_WIDTH = 128

# global single-row entries (rows 0..7)
ROW_EMB_LN_G = 0
ROW_EMB_LN_B = 1
ROW_POOLER_B = 2
ROW_HEADS_B = 3
ROW_HEAD_MASK0 = 4          # per-head 0/1 lane masks over the hidden dim (static)

OFF_POOLER_W = 8                            # [H, H]
OFF_HEADS_W = OFF_POOLER_W + HIDDEN         # [H, 2]  (hate col 0, fake col 1)
OFF_LAYER = OFF_HEADS_W + HIDDEN            # per-layer blocks start here

# per-layer relative row offsets
ROW_WQKV = 0                                # [H, 3H]   fused Wq|Wk|Wv
ROW_WO = ROW_WQKV + HIDDEN                  # [H, H]
ROW_W1 = ROW_WO + HIDDEN                    # [H, I]
ROW_W2 = ROW_W1 + HIDDEN                    # [I, H]
ROW_LVEC = ROW_W2 + INTERMEDIATE            # 8-row vector block:
ROW_BQKV = ROW_LVEC + 0                     #   [1, 3H]
ROW_BO = ROW_LVEC + 1                       #   [1, H]
ROW_LN1_G = ROW_LVEC + 2
ROW_LN1_B = ROW_LVEC + 3
ROW_B1 = ROW_LVEC + 4                       #   [1, I]
ROW_B2 = ROW_LVEC + 5
ROW_LN2_G = ROW_LVEC + 6
ROW_LN2_B = ROW_LVEC + 7
LAYER_STRIDE = ROW_LVEC + 8

SLAB_ROWS = OFF_LAYER + N_LAYERS * LAYER_STRIDE     # 408 rows -> ~204 KiB f32


# ------------------------------- fused Pallas kernel -------------------------------
def _bert_fused_kernel(x_ref, bias_ref, slab_ref, logits_ref, *, batch, seq):
    f32 = jnp.float32
    ntok = batch * seq
    H, I = HIDDEN, INTERMEDIATE

    def vrow(row, ncols):
        return slab_ref[row:row + 1, 0:ncols]           # [1, ncols] static slice

    def layernorm(v, g, b):
        mean = jnp.mean(v, axis=-1, keepdims=True)
        var = jnp.mean((v - mean) ** 2, axis=-1, keepdims=True)
        return (v - mean) * jax.lax.rsqrt(var + LN_EPS) * g + b

    def gelu(v):
        # TODO(synk): HF BERT "gelu" is erf-based; tanh approximation used for TPU EUP support.
        return 0.5 * v * (1.0 + jnp.tanh(0.7978845608028654 * (v + 0.044715 * v * v * v)))

    # Static per-head lane masks, pre-baked into the slab (no in-kernel iota/compare).
    masks = [vrow(ROW_HEAD_MASK0 + h, H) for h in range(N_HEADS)]

    bias = bias_ref[...]                                 # [N_HEADS*BS, BS] head-stacked bias
    scale = 1.0 / math.sqrt(HEAD_DIM)

    # Embedding LayerNorm (no residual, no zero-array traffic).
    x = layernorm(x_ref[...], vrow(ROW_EMB_LN_G, H), vrow(ROW_EMB_LN_B, H))

    for l in range(N_LAYERS):                            # static unroll; weights VMEM-resident
        base = OFF_LAYER + l * LAYER_STRIDE

        # ---- fused QKV: one MXU matmul instead of three --------------------------------
        wqkv = slab_ref[base + ROW_WQKV: base + ROW_WQKV + H, 0:3 * H]
        qkv = jnp.dot(x, wqkv, preferred_element_type=f32) + vrow(base + ROW_BQKV, 3 * H)
        q = qkv[:, 0:H]
        k = qkv[:, H:2 * H]
        v = qkv[:, 2 * H:3 * H]

        # ---- head-batched attention: one score matmul + one softmax + one P@V ----------
        # Masking only the Q side is exact: (q*m)@k^T == (q*m)@(k*m)^T for 0/1 masks.
        q_st = jnp.concatenate([q * m for m in masks], axis=0)        # [NH*BS, H]
        s = jax.lax.dot_general(q_st, k, (((1,), (1,)), ((), ())),
                                preferred_element_type=f32) * scale + bias
        s = s - jnp.max(s, axis=-1, keepdims=True)
        p = jnp.exp(s)
        p = p * pl.reciprocal(jnp.sum(p, axis=-1, keepdims=True), approx=True)
        c = jnp.dot(p, v, preferred_element_type=f32)                 # [NH*BS, H]
        ctx = c[0:ntok, :] * masks[0]
        for h in range(1, N_HEADS):                                   # aligned sublane splits
            ctx = ctx + c[h * ntok:(h + 1) * ntok, :] * masks[h]

        wo = slab_ref[base + ROW_WO: base + ROW_WO + H, 0:H]
        attn_out = jnp.dot(ctx, wo, preferred_element_type=f32) + vrow(base + ROW_BO, H)
        x = layernorm(attn_out + x, vrow(base + ROW_LN1_G, H), vrow(base + ROW_LN1_B, H))

        # ---- FFN with fused GELU / add+LN epilogues -------------------------------------
        w1 = slab_ref[base + ROW_W1: base + ROW_W1 + H, 0:I]
        hmid = gelu(jnp.dot(x, w1, preferred_element_type=f32) + vrow(base + ROW_B1, I))
        w2 = slab_ref[base + ROW_W2: base + ROW_W2 + I, 0:H]
        ffn = jnp.dot(hmid, w2, preferred_element_type=f32) + vrow(base + ROW_B2, H)
        x = layernorm(ffn + x, vrow(base + ROW_LN2_G, H), vrow(base + ROW_LN2_B, H))

    # [CLS] rows (b*seq): aligned static sublane slices + concat — no selection matmul.
    cls = jnp.concatenate([x[b * seq: b * seq + 1, :] for b in range(batch)], axis=0)  # [B,H]

    pooler_w = slab_ref[OFF_POOLER_W: OFF_POOLER_W + H, 0:H]
    pooled = jnp.tanh(jnp.dot(cls, pooler_w, preferred_element_type=f32)
                      + vrow(ROW_POOLER_B, H))

    heads_w = slab_ref[OFF_HEADS_W: OFF_HEADS_W + H, 0:2]             # hate | fake columns
    logits = jnp.dot(pooled, heads_w, preferred_element_type=f32) + vrow(ROW_HEADS_B, 2)
    logits_ref[...] = logits.astype(logits_ref.dtype)                 # [B, 2]


# ------------------------------ parameter setup --------------------------------
def init_params(key):
    def normal(k, shape):
        return 0.02 * jax.random.normal(k, shape, dtype=jnp.float32)

    keys = iter(jax.random.split(key, 16))
    L, H, I = N_LAYERS, HIDDEN, INTERMEDIATE
    return {
        "word_emb": normal(next(keys), (VOCAB, H)),
        "pos_emb": normal(next(keys), (MAX_POS, H)),
        "type_emb": normal(next(keys), (TYPE_VOCAB, H)),
        "emb_ln_g": jnp.ones((1, H), jnp.float32),
        "emb_ln_b": jnp.zeros((1, H), jnp.float32),
        "wq": normal(next(keys), (L, H, H)), "bq": jnp.zeros((L, 1, H), jnp.float32),
        "wk": normal(next(keys), (L, H, H)), "bk": jnp.zeros((L, 1, H), jnp.float32),
        "wv": normal(next(keys), (L, H, H)), "bv": jnp.zeros((L, 1, H), jnp.float32),
        "wo": normal(next(keys), (L, H, H)), "bo": jnp.zeros((L, 1, H), jnp.float32),
        "ln1_g": jnp.ones((L, 1, H), jnp.float32), "ln1_b": jnp.zeros((L, 1, H), jnp.float32),
        "w1": normal(next(keys), (L, H, I)), "b1": jnp.zeros((L, 1, I), jnp.float32),
        "w2": normal(next(keys), (L, I, H)), "b2": jnp.zeros((L, 1, H), jnp.float32),
        "ln2_g": jnp.ones((L, 1, H), jnp.float32), "ln2_b": jnp.zeros((L, 1, H), jnp.float32),
        "pooler_w": normal(next(keys), (H, H)), "pooler_b": jnp.zeros((1, H), jnp.float32),
        # classifier heads fused: column 0 = hate, column 1 = fake
        "heads_w": normal(next(keys), (H, 2)), "heads_b": jnp.zeros((1, 2), jnp.float32),
    }


def pack_params(params):
    """One-time packing of all encoder/pooler/head weights into a single lane-dense slab."""
    H = HIDDEN
    slab = jnp.zeros((SLAB_ROWS, SLAB_WIDTH), jnp.float32)

    def put(s, row, mat):
        mat = jnp.asarray(mat, jnp.float32)
        if mat.ndim == 1:
            mat = mat[None, :]
        r, c = mat.shape
        return s.at[row:row + r, 0:c].set(mat)

    # static per-head 0/1 lane masks over the hidden dim
    col = jnp.arange(H)
    for h in range(N_HEADS):
        mask = ((col >= h * HEAD_DIM) & (col < (h + 1) * HEAD_DIM)).astype(jnp.float32)
        slab = put(slab, ROW_HEAD_MASK0 + h, mask)

    slab = put(slab, ROW_EMB_LN_G, params["emb_ln_g"])
    slab = put(slab, ROW_EMB_LN_B, params["emb_ln_b"])
    slab = put(slab, ROW_POOLER_B, params["pooler_b"])
    slab = put(slab, ROW_HEADS_B, params["heads_b"])
    slab = put(slab, OFF_POOLER_W, params["pooler_w"])
    slab = put(slab, OFF_HEADS_W, params["heads_w"])

    for l in range(N_LAYERS):
        base = OFF_LAYER + l * LAYER_STRIDE
        wqkv = jnp.concatenate([params["wq"][l], params["wk"][l], params["wv"][l]], axis=-1)
        bqkv = jnp.concatenate([params["bq"][l], params["bk"][l], params["bv"][l]], axis=-1)
        slab = put(slab, base + ROW_WQKV, wqkv)
        slab = put(slab, base + ROW_BQKV, bqkv)
        slab = put(slab, base + ROW_WO, params["wo"][l])
        slab = put(slab, base + ROW_BO, params["bo"][l])
        slab = put(slab, base + ROW_LN1_G, params["ln1_g"][l])
        slab = put(slab, base + ROW_LN1_B, params["ln1_b"][l])
        slab = put(slab, base + ROW_W1, params["w1"][l])
        slab = put(slab, base + ROW_B1, params["b1"][l])
        slab = put(slab, base + ROW_W2, params["w2"][l])
        slab = put(slab, base + ROW_B2, params["b2"][l])
        slab = put(slab, base + ROW_LN2_G, params["ln2_g"][l])
        slab = put(slab, base + ROW_LN2_B, params["ln2_b"][l])
    return slab


# -------------------------------- forward pass ----------------------------------
def multitask_bert_forward(params, slab, input_ids, attention_mask):
    batch, seq = input_ids.shape
    ntok = batch * seq

    # Embedding gather (plain-JAX glue) -> [B*S, H] token-major activations.
    # TODO(synk): token_type_ids hard-coded to 0 (single-segment inputs).
    emb = (
        params["word_emb"][input_ids]
        + params["pos_emb"][:seq][None, :, :]
        + params["type_emb"][0][None, None, :]
    )
    x = emb.reshape(ntok, HIDDEN).astype(jnp.float32)

    # HF-style additive key-padding mask extended to a block-diagonal [BS, BS] bias so the
    # fused kernel attends over the whole token tile; tiled for both heads (head-stacked).
    tok_batch = jnp.repeat(jnp.arange(batch, dtype=jnp.int32), seq)       # [BS]
    same_seq = tok_batch[:, None] == tok_batch[None, :]
    key_ok = attention_mask.reshape(ntok).astype(bool)
    bias2d = jnp.where(same_seq & key_ok[None, :], 0.0, -10000.0).astype(jnp.float32)
    bias_st = jnp.tile(bias2d, (N_HEADS, 1))                              # [NH*BS, BS]

    kernel = functools.partial(_bert_fused_kernel, batch=batch, seq=seq)
    # Single pallas_call for the whole model; 3 operands (activations, mask bias, weight
    # slab), all pinned to VMEM.  No grid at this toy size — at real BERT dims, tile token
    # rows with a leading "parallel" grid axis (v7x 2 TCs) and budget VMEM explicitly.
    logits = pl.pallas_call(
        kernel,
        out_shape=jax.ShapeDtypeStruct((batch, 2), jnp.float32),
        in_specs=[pl.BlockSpec(memory_space=pltpu.MemorySpace.VMEM)] * 3,
        out_specs=pl.BlockSpec(memory_space=pltpu.MemorySpace.VMEM),
    )(x, bias_st, slab)

    hate_logits = logits[:, 0:1]
    fake_logits = logits[:, 1:2]
    return hate_logits, fake_logits


# ------------------------------------ main ---------------------------------------
if __name__ == "__main__":
    key = jax.random.PRNGKey(0)
    k_param, k_ids = jax.random.split(key)

    params = init_params(k_param)
    slab = pack_params(params)          # one-time weight packing (outside the jitted forward)

    batch, seq = 2, 8
    input_ids = jax.random.randint(k_ids, (batch, seq), 0, VOCAB, dtype=jnp.int32)
    attention_mask = jnp.ones((batch, seq), dtype=jnp.int32)

    fwd = jax.jit(multitask_bert_forward)
    hate_logits, fake_logits = fwd(params, slab, input_ids, attention_mask)
    jax.block_until_ready((hate_logits, fake_logits))

    assert hate_logits.shape == (batch, 1) and fake_logits.shape == (batch, 1)
    print("KERNEL_OK")
</pallas_src>

<mosaic_0001>
module attributes {stable_mosaic.version = 11 : i64} {
  func.func @_bert_fused_kernel(%arg0: memref<16x32xf32, #tpu.memory_space<vmem>>, %arg1: memref<32x16xf32, #tpu.memory_space<vmem>>, %arg2: memref<408x128xf32, #tpu.memory_space<vmem>>, %arg3: memref<2x2xf32, #tpu.memory_space<vmem>>) attributes {dimension_semantics = [], scalar_prefetch = 0 : i64, scratch_operands = 0 : i64, tpu.core_type = #tpu.core_type<tc>} {
    %c4 = arith.constant 4 : index
    %c0 = arith.constant 0 : index
    %0 = vector.load %arg2[%c4, %c0] : memref<408x128xf32, #tpu.memory_space<vmem>>, vector<1x32xf32>
    %c5 = arith.constant 5 : index
    %c0_0 = arith.constant 0 : index
    %1 = vector.load %arg2[%c5, %c0_0] : memref<408x128xf32, #tpu.memory_space<vmem>>, vector<1x32xf32>
    %c0_1 = arith.constant 0 : index
    %c0_2 = arith.constant 0 : index
    %2 = vector.load %arg1[%c0_1, %c0_2] : memref<32x16xf32, #tpu.memory_space<vmem>>, vector<32x16xf32>
    %c0_3 = arith.constant 0 : index
    %c0_4 = arith.constant 0 : index
    %3 = vector.load %arg0[%c0_3, %c0_4] : memref<16x32xf32, #tpu.memory_space<vmem>>, vector<16x32xf32>
    %c0_5 = arith.constant 0 : index
    %c0_6 = arith.constant 0 : index
    %4 = vector.load %arg2[%c0_5, %c0_6] : memref<408x128xf32, #tpu.memory_space<vmem>>, vector<1x32xf32>
    %c1 = arith.constant 1 : index
    %c0_7 = arith.constant 0 : index
    %5 = vector.load %arg2[%c1, %c0_7] : memref<408x128xf32, #tpu.memory_space<vmem>>, vector<1x32xf32>
    %cst = arith.constant dense<0.000000e+00> : vector<16xf32>
    %6 = vector.multi_reduction <add>, %3, %cst [1] : vector<16x32xf32> to vector<16xf32>
    %7 = vector.shape_cast %6 : vector<16xf32> to vector<16x1xf32>
    %cst_8 = arith.constant 3.200000e+01 : f32
    %8 = vector.broadcast %cst_8 : f32 to vector<16x1xf32>
    %9 = arith.divf %7, %8 : vector<16x1xf32>
    %10 = vector.broadcast %9 : vector<16x1xf32> to vector<16x32xf32>
    %11 = arith.subf %3, %10 : vector<16x32xf32>
    %12 = arith.mulf %11, %11 : vector<16x32xf32>
    %cst_9 = arith.constant dense<0.000000e+00> : vector<16xf32>
    %13 = vector.multi_reduction <add>, %12, %cst_9 [1] : vector<16x32xf32> to vector<16xf32>
    %14 = vector.shape_cast %13 : vector<16xf32> to vector<16x1xf32>
    %cst_10 = arith.constant 3.200000e+01 : f32
    %15 = vector.broadcast %cst_10 : f32 to vector<16x1xf32>
    %16 = arith.divf %14, %15 : vector<16x1xf32>
    %17 = vector.broadcast %9 : vector<16x1xf32> to vector<16x32xf32>
    %18 = arith.subf %3, %17 : vector<16x32xf32>
    %cst_11 = arith.constant 9.99999996E-13 : f32
    %19 = vector.broadcast %cst_11 : f32 to vector<16x1xf32>
    %20 = arith.addf %16, %19 : vector<16x1xf32>
    %21 = math.rsqrt %20 : vector<16x1xf32>
    %22 = vector.broadcast %21 : vector<16x1xf32> to vector<16x32xf32>
    %23 = arith.mulf %18, %22 : vector<16x32xf32>
    %24 = vector.broadcast %4 : vector<1x32xf32> to vector<16x32xf32>
    %25 = arith.mulf %23, %24 : vector<16x32xf32>
    %26 = vector.broadcast %5 : vector<1x32xf32> to vector<16x32xf32>
    %27 = arith.addf %25, %26 : vector<16x32xf32>
    %c72 = arith.constant 72 : index
    %c0_12 = arith.constant 0 : index
    %28 = vector.load %arg2[%c72, %c0_12] : memref<408x128xf32, #tpu.memory_space<vmem>>, vector<32x96xf32>
    %cst_13 = arith.constant dense<0.000000e+00> : vector<16x96xf32>
    %29 = tpu.matmul %27, %28, %cst_13 {dimension_numbers = #tpu.dot_dimension_numbers<[1], [0], [0], [1], [0, 0, 1, 1], [], []>} : vector<16x32xf32>, vector<32x96xf32>, vector<16x96xf32> -> vector<16x96xf32>
    %c232 = arith.constant 232 : index
    %c0_14 = arith.constant 0 : index
    %30 = vector.load %arg2[%c232, %c0_14] : memref<408x128xf32, #tpu.memory_space<vmem>>, vector<1x96xf32>
    %31 = vector.broadcast %30 : vector<1x96xf32> to vector<16x96xf32>
    %32 = arith.addf %29, %31 : vector<16x96xf32>
    %33 = vector.extract_strided_slice %32 {offsets = [0, 0], sizes = [16, 32], strides = [1, 1]} : vector<16x96xf32> to vector<16x32xf32>
    %34 = vector.extract_strided_slice %32 {offsets = [0, 32], sizes = [16, 32], strides = [1, 1]} : vector<16x96xf32> to vector<16x32xf32>
    %35 = vector.extract_strided_slice %32 {offsets = [0, 64], sizes = [16, 32], strides = [1, 1]} : vector<16x96xf32> to vector<16x32xf32>
    %36 = vector.broadcast %0 : vector<1x32xf32> to vector<16x32xf32>
    %37 = arith.mulf %33, %36 : vector<16x32xf32>
    %38 = vector.broadcast %1 : vector<1x32xf32> to vector<16x32xf32>
    %39 = arith.mulf %33, %38 : vector<16x32xf32>
    %40 = tpu.concatenate %37, %39 in 0 : vector<16x32xf32>, vector<16x32xf32> -> vector<32x32xf32>
    %cst_15 = arith.constant dense<0.000000e+00> : vector<32x16xf32>
    %41 = tpu.matmul %40, %34, %cst_15 {dimension_numbers = #tpu.dot_dimension_numbers<[1], [1], [0], [0], [0, 0, 1, 0], [], []>} : vector<32x32xf32>, vector<16x32xf32>, vector<32x16xf32> -> vector<32x16xf32>
    %cst_16 = arith.constant 2.500000e-01 : f32
    %42 = vector.broadcast %cst_16 : f32 to vector<32x16xf32>
    %43 = arith.mulf %41, %42 : vector<32x16xf32>
    %44 = arith.addf %43, %2 : vector<32x16xf32>
    %cst_17 = arith.constant dense<0xFF800000> : vector<32xf32>
    %45 = vector.multi_reduction <maximumf>, %44, %cst_17 [1] : vector<32x16xf32> to vector<32xf32>
    %46 = vector.shape_cast %45 : vector<32xf32> to vector<32x1xf32>
    %47 = vector.broadcast %46 : vector<32x1xf32> to vector<32x16xf32>
    %48 = arith.subf %44, %47 : vector<32x16xf32>
    %49 = math.exp %48 : vector<32x16xf32>
    %cst_18 = arith.constant dense<0.000000e+00> : vector<32xf32>
    %50 = vector.multi_reduction <add>, %49, %cst_18 [1] : vector<32x16xf32> to vector<32xf32>
    %51 = vector.shape_cast %50 : vector<32xf32> to vector<32x1xf32>
    %52 = tpu.reciprocal %51 {approx = true} : vector<32x1xf32> -> vector<32x1xf32>
    %53 = vector.broadcast %52 : vector<32x1xf32> to vector<32x16xf32>
    %54 = arith.mulf %49, %53 : vector<32x16xf32>
    %cst_19 = arith.constant dense<0.000000e+00> : vector<32x32xf32>
    %55 = tpu.matmul %54, %35, %cst_19 {dimension_numbers = #tpu.dot_dimension_numbers<[1], [0], [0], [1], [0, 0, 1, 1], [], []>} : vector<32x16xf32>, vector<16x32xf32>, vector<32x32xf32> -> vector<32x32xf32>
    %56 = vector.extract_strided_slice %55 {offsets = [0, 0], sizes = [16, 32], strides = [1, 1]} : vector<32x32xf32> to vector<16x32xf32>
    %57 = vector.broadcast %0 : vector<1x32xf32> to vector<16x32xf32>
    %58 = arith.mulf %56, %57 : vector<16x32xf32>
    %59 = vector.extract_strided_slice %55 {offsets = [16, 0], sizes = [16, 32], strides = [1, 1]} : vector<32x32xf32> to vector<16x32xf32>
    %60 = vector.broadcast %1 : vector<1x32xf32> to vector<16x32xf32>
    %61 = arith.mulf %59, %60 : vector<16x32xf32>
    %62 = arith.addf %58, %61 : vector<16x32xf32>
    %c104 = arith.constant 104 : index
    %c0_20 = arith.constant 0 : index
    %63 = vector.load %arg2[%c104, %c0_20] : memref<408x128xf32, #tpu.memory_space<vmem>>, vector<32x32xf32>
    %cst_21 = arith.constant dense<0.000000e+00> : vector<16x32xf32>
    %64 = tpu.matmul %62, %63, %cst_21 {dimension_numbers = #tpu.dot_dimension_numbers<[1], [0], [0], [1], [0, 0, 1, 1], [], []>} : vector<16x32xf32>, vector<32x32xf32>, vector<16x32xf32> -> vector<16x32xf32>
    %c233 = arith.constant 233 : index
    %c0_22 = arith.constant 0 : index
    %65 = vector.load %arg2[%c233, %c0_22] : memref<408x128xf32, #tpu.memory_space<vmem>>, vector<1x32xf32>
    %66 = vector.broadcast %65 : vector<1x32xf32> to vector<16x32xf32>
    %67 = arith.addf %64, %66 : vector<16x32xf32>
    %68 = arith.addf %67, %27 : vector<16x32xf32>
    %c234 = arith.constant 234 : index
    %c0_23 = arith.constant 0 : index
    %69 = vector.load %arg2[%c234, %c0_23] : memref<408x128xf32, #tpu.memory_space<vmem>>, vector<1x32xf32>
    %c235 = arith.constant 235 : index
    %c0_24 = arith.constant 0 : index
    %70 = vector.load %arg2[%c235, %c0_24] : memref<408x128xf32, #tpu.memory_space<vmem>>, vector<1x32xf32>
    %cst_25 = arith.constant dense<0.000000e+00> : vector<16xf32>
    %71 = vector.multi_reduction <add>, %68, %cst_25 [1] : vector<16x32xf32> to vector<16xf32>
    %72 = vector.shape_cast %71 : vector<16xf32> to vector<16x1xf32>
    %cst_26 = arith.constant 3.200000e+01 : f32
    %73 = vector.broadcast %cst_26 : f32 to vector<16x1xf32>
    %74 = arith.divf %72, %73 : vector<16x1xf32>
    %75 = vector.broadcast %74 : vector<16x1xf32> to vector<16x32xf32>
    %76 = arith.subf %68, %75 : vector<16x32xf32>
    %77 = arith.mulf %76, %76 : vector<16x32xf32>
    %cst_27 = arith.constant dense<0.000000e+00> : vector<16xf32>
    %78 = vector.multi_reduction <add>, %77, %cst_27 [1] : vector<16x32xf32> to vector<16xf32>
    %79 = vector.shape_cast %78 : vector<16xf32> to vector<16x1xf32>
    %cst_28 = arith.constant 3.200000e+01 : f32
    %80 = vector.broadcast %cst_28 : f32 to vector<16x1xf32>
    %81 = arith.divf %79, %80 : vector<16x1xf32>
    %82 = vector.broadcast %74 : vector<16x1xf32> to vector<16x32xf32>
    %83 = arith.subf %68, %82 : vector<16x32xf32>
    %cst_29 = arith.constant 9.99999996E-13 : f32
    %84 = vector.broadcast %cst_29 : f32 to vector<16x1xf32>
    %85 = arith.addf %81, %84 : vector<16x1xf32>
    %86 = math.rsqrt %85 : vector<16x1xf32>
    %87 = vector.broadcast %86 : vector<16x1xf32> to vector<16x32xf32>
    %88 = arith.mulf %83, %87 : vector<16x32xf32>
    %89 = vector.broadcast %69 : vector<1x32xf32> to vector<16x32xf32>
    %90 = arith.mulf %88, %89 : vector<16x32xf32>
    %91 = vector.broadcast %70 : vector<1x32xf32> to vector<16x32xf32>
    %92 = arith.addf %90, %91 : vector<16x32xf32>
    %c136 = arith.constant 136 : index
    %c0_30 = arith.constant 0 : index
    %93 = vector.load %arg2[%c136, %c0_30] : memref<408x128xf32, #tpu.memory_space<vmem>>, vector<32x64xf32>
    %cst_31 = arith.constant dense<0.000000e+00> : vector<16x64xf32>
    %94 = tpu.matmul %92, %93, %cst_31 {dimension_numbers = #tpu.dot_dimension_numbers<[1], [0], [0], [1], [0, 0, 1, 1], [], []>} : vector<16x32xf32>, vector<32x64xf32>, vector<16x64xf32> -> vector<16x64xf32>
    %c236 = arith.constant 236 : index
    %c0_32 = arith.constant 0 : index
    %95 = vector.load %arg2[%c236, %c0_32] : memref<408x128xf32, #tpu.memory_space<vmem>>, vector<1x64xf32>
    %96 = vector.broadcast %95 : vector<1x64xf32> to vector<16x64xf32>
    %97 = arith.addf %94, %96 : vector<16x64xf32>
    %cst_33 = arith.constant 5.000000e-01 : f32
    %98 = vector.broadcast %cst_33 : f32 to vector<16x64xf32>
    %99 = arith.mulf %98, %97 : vector<16x64xf32>
    %cst_34 = arith.constant 4.471500e-02 : f32
    %100 = vector.broadcast %cst_34 : f32 to vector<16x64xf32>
    %101 = arith.mulf %100, %97 : vector<16x64xf32>
    %102 = arith.mulf %101, %97 : vector<16x64xf32>
    %103 = arith.mulf %102, %97 : vector<16x64xf32>
    %104 = arith.addf %97, %103 : vector<16x64xf32>
    %cst_35 = arith.constant 0.797884583 : f32
    %105 = vector.broadcast %cst_35 : f32 to vector<16x64xf32>
    %106 = arith.mulf %105, %104 : vector<16x64xf32>
    %107 = math.tanh %106 : vector<16x64xf32>
    %cst_36 = arith.constant 1.000000e+00 : f32
    %108 = vector.broadcast %cst_36 : f32 to vector<16x64xf32>
    %109 = arith.addf %108, %107 : vector<16x64xf32>
    %110 = arith.mulf %99, %109 : vector<16x64xf32>
    %c168 = arith.constant 168 : index
    %c0_37 = arith.constant 0 : index
    %111 = vector.load %arg2[%c168, %c0_37] : memref<408x128xf32, #tpu.memory_space<vmem>>, vector<64x32xf32>
    %cst_38 = arith.constant dense<0.000000e+00> : vector<16x32xf32>
    %112 = tpu.matmul %110, %111, %cst_38 {dimension_numbers = #tpu.dot_dimension_numbers<[1], [0], [0], [1], [0, 0, 1, 1], [], []>} : vector<16x64xf32>, vector<64x32xf32>, vector<16x32xf32> -> vector<16x32xf32>
    %c237 = arith.constant 237 : index
    %c0_39 = arith.constant 0 : index
    %113 = vector.load %arg2[%c237, %c0_39] : memref<408x128xf32, #tpu.memory_space<vmem>>, vector<1x32xf32>
    %114 = vector.broadcast %113 : vector<1x32xf32> to vector<16x32xf32>
    %115 = arith.addf %112, %114 : vector<16x32xf32>
    %116 = arith.addf %115, %92 : vector<16x32xf32>
    %c238 = arith.constant 238 : index
    %c0_40 = arith.constant 0 : index
    %117 = vector.load %arg2[%c238, %c0_40] : memref<408x128xf32, #tpu.memory_space<vmem>>, vector<1x32xf32>
    %c239 = arith.constant 239 : index
    %c0_41 = arith.constant 0 : index
    %118 = vector.load %arg2[%c239, %c0_41] : memref<408x128xf32, #tpu.memory_space<vmem>>, vector<1x32xf32>
    %cst_42 = arith.constant dense<0.000000e+00> : vector<16xf32>
    %119 = vector.multi_reduction <add>, %116, %cst_42 [1] : vector<16x32xf32> to vector<16xf32>
    %120 = vector.shape_cast %119 : vector<16xf32> to vector<16x1xf32>
    %cst_43 = arith.constant 3.200000e+01 : f32
    %121 = vector.broadcast %cst_43 : f32 to vector<16x1xf32>
    %122 = arith.divf %120, %121 : vector<16x1xf32>
    %123 = vector.broadcast %122 : vector<16x1xf32> to vector<16x32xf32>
    %124 = arith.subf %116, %123 : vector<16x32xf32>
    %125 = arith.mulf %124, %124 : vector<16x32xf32>
    %cst_44 = arith.constant dense<0.000000e+00> : vector<16xf32>
    %126 = vector.multi_reduction <add>, %125, %cst_44 [1] : vector<16x32xf32> to vector<16xf32>
    %127 = vector.shape_cast %126 : vector<16xf32> to vector<16x1xf32>
    %cst_45 = arith.constant 3.200000e+01 : f32
    %128 = vector.broadcast %cst_45 : f32 to vector<16x1xf32>
    %129 = arith.divf %127, %128 : vector<16x1xf32>
    %130 = vector.broadcast %122 : vector<16x1xf32> to vector<16x32xf32>
    %131 = arith.subf %116, %130 : vector<16x32xf32>
    %cst_46 = arith.constant 9.99999996E-13 : f32
    %132 = vector.broadcast %cst_46 : f32 to vector<16x1xf32>
    %133 = arith.addf %129, %132 : vector<16x1xf32>
    %134 = math.rsqrt %133 : vector<16x1xf32>
    %135 = vector.broadcast %134 : vector<16x1xf32> to vector<16x32xf32>
    %136 = arith.mulf %131, %135 : vector<16x32xf32>
    %137 = vector.broadcast %117 : vector<1x32xf32> to vector<16x32xf32>
    %138 = arith.mulf %136, %137 : vector<16x32xf32>
    %139 = vector.broadcast %118 : vector<1x32xf32> to vector<16x32xf32>
    %140 = arith.addf %138, %139 : vector<16x32xf32>
    %c240 = arith.constant 240 : index
    %c0_47 = arith.constant 0 : index
    %141 = vector.load %arg2[%c240, %c0_47] : memref<408x128xf32, #tpu.memory_space<vmem>>, vector<32x96xf32>
    %cst_48 = arith.constant dense<0.000000e+00> : vector<16x96xf32>
    %142 = tpu.matmul %140, %141, %cst_48 {dimension_numbers = #tpu.dot_dimension_numbers<[1], [0], [0], [1], [0, 0, 1, 1], [], []>} : vector<16x32xf32>, vector<32x96xf32>, vector<16x96xf32> -> vector<16x96xf32>
    %c400 = arith.constant 400 : index
    %c0_49 = arith.constant 0 : index
    %143 = vector.load %arg2[%c400, %c0_49] : memref<408x128xf32, #tpu.memory_space<vmem>>, vector<1x96xf32>
    %144 = vector.broadcast %143 : vector<1x96xf32> to vector<16x96xf32>
    %145 = arith.addf %142, %144 : vector<16x96xf32>
    %146 = vector.extract_strided_slice %145 {offsets = [0, 0], sizes = [16, 32], strides = [1, 1]} : vector<16x96xf32> to vector<16x32xf32>
    %147 = vector.extract_strided_slice %145 {offsets = [0, 32], sizes = [16, 32], strides = [1, 1]} : vector<16x96xf32> to vector<16x32xf32>
    %148 = vector.extract_strided_slice %145 {offsets = [0, 64], sizes = [16, 32], strides = [1, 1]} : vector<16x96xf32> to vector<16x32xf32>
    %149 = vector.broadcast %0 : vector<1x32xf32> to vector<16x32xf32>
    %150 = arith.mulf %146, %149 : vector<16x32xf32>
    %151 = vector.broadcast %1 : vector<1x32xf32> to vector<16x32xf32>
    %152 = arith.mulf %146, %151 : vector<16x32xf32>
    %153 = tpu.concatenate %150, %152 in 0 : vector<16x32xf32>, vector<16x32xf32> -> vector<32x32xf32>
    %cst_50 = arith.constant dense<0.000000e+00> : vector<32x16xf32>
    %154 = tpu.matmul %153, %147, %cst_50 {dimension_numbers = #tpu.dot_dimension_numbers<[1], [1], [0], [0], [0, 0, 1, 0], [], []>} : vector<32x32xf32>, vector<16x32xf32>, vector<32x16xf32> -> vector<32x16xf32>
    %cst_51 = arith.constant 2.500000e-01 : f32
    %155 = vector.broadcast %cst_51 : f32 to vector<32x16xf32>
    %156 = arith.mulf %154, %155 : vector<32x16xf32>
    %157 = arith.addf %156, %2 : vector<32x16xf32>
    %cst_52 = arith.constant dense<0xFF800000> : vector<32xf32>
    %158 = vector.multi_reduction <maximumf>, %157, %cst_52 [1] : vector<32x16xf32> to vector<32xf32>
    %159 = vector.shape_cast %158 : vector<32xf32> to vector<32x1xf32>
    %160 = vector.broadcast %159 : vector<32x1xf32> to vector<32x16xf32>
    %161 = arith.subf %157, %160 : vector<32x16xf32>
    %162 = math.exp %161 : vector<32x16xf32>
    %cst_53 = arith.constant dense<0.000000e+00> : vector<32xf32>
    %163 = vector.multi_reduction <add>, %162, %cst_53 [1] : vector<32x16xf32> to vector<32xf32>
    %164 = vector.shape_cast %163 : vector<32xf32> to vector<32x1xf32>
    %165 = tpu.reciprocal %164 {approx = true} : vector<32x1xf32> -> vector<32x1xf32>
    %166 = vector.broadcast %165 : vector<32x1xf32> to vector<32x16xf32>
    %167 = arith.mulf %162, %166 : vector<32x16xf32>
    %cst_54 = arith.constant dense<0.000000e+00> : vector<32x32xf32>
    %168 = tpu.matmul %167, %148, %cst_54 {dimension_numbers = #tpu.dot_dimension_numbers<[1], [0], [0], [1], [0, 0, 1, 1], [], []>} : vector<32x16xf32>, vector<16x32xf32>, vector<32x32xf32> -> vector<32x32xf32>
    %169 = vector.extract_strided_slice %168 {offsets = [0, 0], sizes = [16, 32], strides = [1, 1]} : vector<32x32xf32> to vector<16x32xf32>
    %170 = vector.broadcast %0 : vector<1x32xf32> to vector<16x32xf32>
    %171 = arith.mulf %169, %170 : vector<16x32xf32>
    %172 = vector.extract_strided_slice %168 {offsets = [16, 0], sizes = [16, 32], strides = [1, 1]} : vector<32x32xf32> to vector<16x32xf32>
    %173 = vector.broadcast %1 : vector<1x32xf32> to vector<16x32xf32>
    %174 = arith.mulf %172, %173 : vector<16x32xf32>
    %175 = arith.addf %171, %174 : vector<16x32xf32>
    %c272 = arith.constant 272 : index
    %c0_55 = arith.constant 0 : index
    %176 = vector.load %arg2[%c272, %c0_55] : memref<408x128xf32, #tpu.memory_space<vmem>>, vector<32x32xf32>
    %cst_56 = arith.constant dense<0.000000e+00> : vector<16x32xf32>
    %177 = tpu.matmul %175, %176, %cst_56 {dimension_numbers = #tpu.dot_dimension_numbers<[1], [0], [0], [1], [0, 0, 1, 1], [], []>} : vector<16x32xf32>, vector<32x32xf32>, vector<16x32xf32> -> vector<16x32xf32>
    %c401 = arith.constant 401 : index
    %c0_57 = arith.constant 0 : index
    %178 = vector.load %arg2[%c401, %c0_57] : memref<408x128xf32, #tpu.memory_space<vmem>>, vector<1x32xf32>
    %179 = vector.broadcast %178 : vector<1x32xf32> to vector<16x32xf32>
    %180 = arith.addf %177, %179 : vector<16x32xf32>
    %181 = arith.addf %180, %140 : vector<16x32xf32>
    %c402 = arith.constant 402 : index
    %c0_58 = arith.constant 0 : index
    %182 = vector.load %arg2[%c402, %c0_58] : memref<408x128xf32, #tpu.memory_space<vmem>>, vector<1x32xf32>
    %c403 = arith.constant 403 : index
    %c0_59 = arith.constant 0 : index
    %183 = vector.load %arg2[%c403, %c0_59] : memref<408x128xf32, #tpu.memory_space<vmem>>, vector<1x32xf32>
    %cst_60 = arith.constant dense<0.000000e+00> : vector<16xf32>
    %184 = vector.multi_reduction <add>, %181, %cst_60 [1] : vector<16x32xf32> to vector<16xf32>
    %185 = vector.shape_cast %184 : vector<16xf32> to vector<16x1xf32>
    %cst_61 = arith.constant 3.200000e+01 : f32
    %186 = vector.broadcast %cst_61 : f32 to vector<16x1xf32>
    %187 = arith.divf %185, %186 : vector<16x1xf32>
    %188 = vector.broadcast %187 : vector<16x1xf32> to vector<16x32xf32>
    %189 = arith.subf %181, %188 : vector<16x32xf32>
    %190 = arith.mulf %189, %189 : vector<16x32xf32>
    %cst_62 = arith.constant dense<0.000000e+00> : vector<16xf32>
    %191 = vector.multi_reduction <add>, %190, %cst_62 [1] : vector<16x32xf32> to vector<16xf32>
    %192 = vector.shape_cast %191 : vector<16xf32> to vector<16x1xf32>
    %cst_63 = arith.constant 3.200000e+01 : f32
    %193 = vector.broadcast %cst_63 : f32 to vector<16x1xf32>
    %194 = arith.divf %192, %193 : vector<16x1xf32>
    %195 = vector.broadcast %187 : vector<16x1xf32> to vector<16x32xf32>
    %196 = arith.subf %181, %195 : vector<16x32xf32>
    %cst_64 = arith.constant 9.99999996E-13 : f32
    %197 = vector.broadcast %cst_64 : f32 to vector<16x1xf32>
    %198 = arith.addf %194, %197 : vector<16x1xf32>
    %199 = math.rsqrt %198 : vector<16x1xf32>
    %200 = vector.broadcast %199 : vector<16x1xf32> to vector<16x32xf32>
    %201 = arith.mulf %196, %200 : vector<16x32xf32>
    %202 = vector.broadcast %182 : vector<1x32xf32> to vector<16x32xf32>
    %203 = arith.mulf %201, %202 : vector<16x32xf32>
    %204 = vector.broadcast %183 : vector<1x32xf32> to vector<16x32xf32>
    %205 = arith.addf %203, %204 : vector<16x32xf32>
    %c304 = arith.constant 304 : index
    %c0_65 = arith.constant 0 : index
    %206 = vector.load %arg2[%c304, %c0_65] : memref<408x128xf32, #tpu.memory_space<vmem>>, vector<32x64xf32>
    %cst_66 = arith.constant dense<0.000000e+00> : vector<16x64xf32>
    %207 = tpu.matmul %205, %206, %cst_66 {dimension_numbers = #tpu.dot_dimension_numbers<[1], [0], [0], [1], [0, 0, 1, 1], [], []>} : vector<16x32xf32>, vector<32x64xf32>, vector<16x64xf32> -> vector<16x64xf32>
    %c404 = arith.constant 404 : index
    %c0_67 = arith.constant 0 : index
    %208 = vector.load %arg2[%c404, %c0_67] : memref<408x128xf32, #tpu.memory_space<vmem>>, vector<1x64xf32>
    %209 = vector.broadcast %208 : vector<1x64xf32> to vector<16x64xf32>
    %210 = arith.addf %207, %209 : vector<16x64xf32>
    %cst_68 = arith.constant 5.000000e-01 : f32
    %211 = vector.broadcast %cst_68 : f32 to vector<16x64xf32>
    %212 = arith.mulf %211, %210 : vector<16x64xf32>
    %cst_69 = arith.constant 4.471500e-02 : f32
    %213 = vector.broadcast %cst_69 : f32 to vector<16x64xf32>
    %214 = arith.mulf %213, %210 : vector<16x64xf32>
    %215 = arith.mulf %214, %210 : vector<16x64xf32>
    %216 = arith.mulf %215, %210 : vector<16x64xf32>
    %217 = arith.addf %210, %216 : vector<16x64xf32>
    %cst_70 = arith.constant 0.797884583 : f32
    %218 = vector.broadcast %cst_70 : f32 to vector<16x64xf32>
    %219 = arith.mulf %218, %217 : vector<16x64xf32>
    %220 = math.tanh %219 : vector<16x64xf32>
    %cst_71 = arith.constant 1.000000e+00 : f32
    %221 = vector.broadcast %cst_71 : f32 to vector<16x64xf32>
    %222 = arith.addf %221, %220 : vector<16x64xf32>
    %223 = arith.mulf %212, %222 : vector<16x64xf32>
    %c336 = arith.constant 336 : index
    %c0_72 = arith.constant 0 : index
    %224 = vector.load %arg2[%c336, %c0_72] : memref<408x128xf32, #tpu.memory_space<vmem>>, vector<64x32xf32>
    %cst_73 = arith.constant dense<0.000000e+00> : vector<16x32xf32>
    %225 = tpu.matmul %223, %224, %cst_73 {dimension_numbers = #tpu.dot_dimension_numbers<[1], [0], [0], [1], [0, 0, 1, 1], [], []>} : vector<16x64xf32>, vector<64x32xf32>, vector<16x32xf32> -> vector<16x32xf32>
    %c405 = arith.constant 405 : index
    %c0_74 = arith.constant 0 : index
    %226 = vector.load %arg2[%c405, %c0_74] : memref<408x128xf32, #tpu.memory_space<vmem>>, vector<1x32xf32>
    %227 = vector.broadcast %226 : vector<1x32xf32> to vector<16x32xf32>
    %228 = arith.addf %225, %227 : vector<16x32xf32>
    %229 = arith.addf %228, %205 : vector<16x32xf32>
    %c406 = arith.constant 406 : index
    %c0_75 = arith.constant 0 : index
    %230 = vector.load %arg2[%c406, %c0_75] : memref<408x128xf32, #tpu.memory_space<vmem>>, vector<1x32xf32>
    %c407 = arith.constant 407 : index
    %c0_76 = arith.constant 0 : index
    %231 = vector.load %arg2[%c407, %c0_76] : memref<408x128xf32, #tpu.memory_space<vmem>>, vector<1x32xf32>
    %cst_77 = arith.constant dense<0.000000e+00> : vector<16xf32>
    %232 = vector.multi_reduction <add>, %229, %cst_77 [1] : vector<16x32xf32> to vector<16xf32>
    %233 = vector.shape_cast %232 : vector<16xf32> to vector<16x1xf32>
    %cst_78 = arith.constant 3.200000e+01 : f32
    %234 = vector.broadcast %cst_78 : f32 to vector<16x1xf32>
    %235 = arith.divf %233, %234 : vector<16x1xf32>
    %236 = vector.broadcast %235 : vector<16x1xf32> to vector<16x32xf32>
    %237 = arith.subf %229, %236 : vector<16x32xf32>
    %238 = arith.mulf %237, %237 : vector<16x32xf32>
    %cst_79 = arith.constant dense<0.000000e+00> : vector<16xf32>
    %239 = vector.multi_reduction <add>, %238, %cst_79 [1] : vector<16x32xf32> to vector<16xf32>
    %240 = vector.shape_cast %239 : vector<16xf32> to vector<16x1xf32>
    %cst_80 = arith.constant 3.200000e+01 : f32
    %241 = vector.broadcast %cst_80 : f32 to vector<16x1xf32>
    %242 = arith.divf %240, %241 : vector<16x1xf32>
    %243 = vector.broadcast %235 : vector<16x1xf32> to vector<16x32xf32>
    %244 = arith.subf %229, %243 : vector<16x32xf32>
    %cst_81 = arith.constant 9.99999996E-13 : f32
    %245 = vector.broadcast %cst_81 : f32 to vector<16x1xf32>
    %246 = arith.addf %242, %245 : vector<16x1xf32>
    %247 = math.rsqrt %246 : vector<16x1xf32>
    %248 = vector.broadcast %247 : vector<16x1xf32> to vector<16x32xf32>
    %249 = arith.mulf %244, %248 : vector<16x32xf32>
    %250 = vector.broadcast %230 : vector<1x32xf32> to vector<16x32xf32>
    %251 = arith.mulf %249, %250 : vector<16x32xf32>
    %252 = vector.broadcast %231 : vector<1x32xf32> to vector<16x32xf32>
    %253 = arith.addf %251, %252 : vector<16x32xf32>
    %254 = vector.extract_strided_slice %253 {offsets = [0, 0], sizes = [1, 32], strides = [1, 1]} : vector<16x32xf32> to vector<1x32xf32>
    %255 = vector.extract_strided_slice %253 {offsets = [8, 0], sizes = [1, 32], strides = [1, 1]} : vector<16x32xf32> to vector<1x32xf32>
    %256 = tpu.concatenate %254, %255 in 0 : vector<1x32xf32>, vector<1x32xf32> -> vector<2x32xf32>
    %c8 = arith.constant 8 : index
    %c0_82 = arith.constant 0 : index
    %257 = vector.load %arg2[%c8, %c0_82] : memref<408x128xf32, #tpu.memory_space<vmem>>, vector<32x32xf32>
    %cst_83 = arith.constant dense<0.000000e+00> : vector<2x32xf32>
    %258 = tpu.matmul %256, %257, %cst_83 {dimension_numbers = #tpu.dot_dimension_numbers<[1], [0], [0], [1], [0, 0, 1, 1], [], []>} : vector<2x32xf32>, vector<32x32xf32>, vector<2x32xf32> -> vector<2x32xf32>
    %c2 = arith.constant 2 : index
    %c0_84 = arith.constant 0 : index
    %259 = vector.load %arg2[%c2, %c0_84] : memref<408x128xf32, #tpu.memory_space<vmem>>, vector<1x32xf32>
    %260 = vector.broadcast %259 : vector<1x32xf32> to vector<2x32xf32>
    %261 = arith.addf %258, %260 : vector<2x32xf32>
    %262 = math.tanh %261 : vector<2x32xf32>
    %c40 = arith.constant 40 : index
    %c0_85 = arith.constant 0 : index
    %263 = vector.load %arg2[%c40, %c0_85] : memref<408x128xf32, #tpu.memory_space<vmem>>, vector<32x2xf32>
    %cst_86 = arith.constant dense<0.000000e+00> : vector<2x2xf32>
    %264 = tpu.matmul %262, %263, %cst_86 {dimension_numbers = #tpu.dot_dimension_numbers<[1], [0], [0], [1], [0, 0, 1, 1], [], []>} : vector<2x32xf32>, vector<32x2xf32>, vector<2x2xf32> -> vector<2x2xf32>
    %c3 = arith.constant 3 : index
    %c0_87 = arith.constant 0 : index
    %265 = vector.load %arg2[%c3, %c0_87] : memref<408x128xf32, #tpu.memory_space<vmem>>, vector<1x2xf32>
    %266 = vector.broadcast %265 : vector<1x2xf32> to vector<2x2xf32>
    %267 = arith.addf %264, %266 : vector<2x2xf32>
    %c0_88 = arith.constant 0 : index
    %c0_89 = arith.constant 0 : index
    %268 = vector.load %arg3[%c0_88, %c0_89] : memref<2x2xf32, #tpu.memory_space<vmem>>, vector<2x2xf32>
    tpu.vector_store %arg3[%c0_88, %c0_89], %267 {strides = array<i32>} : memref<2x2xf32, #tpu.memory_space<vmem>>, vector<2x2xf32>,
    return
  }
}

</mosaic_0001>

<llo_original>
// kernel: multitask_bert_forward.1
$region0: #{multitask_bert_forward.1}
  #allocation0 [shape = 'u32[]', space=smem, size = 0x4, offset = 0x4, fixed_abs, tag = 'smem constant byte address 0x4 - core index']
  #allocation1 [shape = 'u32[144,128]{1,0:T(1,128)}', space=vmem, size = 0x12000, scoped, tag = 'internal scratch']
  %s0 = inlined_call_operand.vmem [shape: f32[16,32], index: 0, kind: input, shape index: {}]
  %s1 = inlined_call_operand.vmem [shape: f32[32,16], index: 1, kind: input, shape index: {}]
  %s2 = inlined_call_operand.hbm [shape: f32[408,128], index: 2, kind: input, shape index: {}]
  %s3 = inlined_call_operand.vmem [shape: f32[2,2], index: 3, kind: output, shape index: {}]
  %s4 = sld [smem:[#allocation0]]
  $region26: #{multitask_bert_forward.1} parent=0
    _
  %s6 = ssub.s32 1, %s4
  %s7 = scalar_select 0, %s6, %s4
  $region1: #{multitask_bert_forward.1} parent=0
    #allocation2 [shape = 'u8[208896]{0}', space=vmem, size = 0x33000, scoped, tag = 'input window, operand 2, single buffered']
    #allocation3 [shape = 's32[1]{0}', space=sflag, size = 0x4, scoped, tag = 'scoped memory for multitask_bert_forward.1']
    %8 = vsyncpa [#allocation3], 0
    // Predicated region
    $region2: #{multitask_bert_forward.1} parent=1 // pred_check
      _
    $region3: #{multitask_bert_forward.1} parent=1 // pred_check_branch
      %10 = sbr.rel (0) target = $region5
    $region4: #{multitask_bert_forward.1} parent=1 // pred_region
      _
    $region5: #{multitask_bert_forward.1} parent=1 // pred_fallthru
      _
    // Predicated region
    $region6: #{multitask_bert_forward.1} parent=1 // pred_check
      _
    $region7: #{multitask_bert_forward.1} parent=1 // pred_check_branch
      %12 = sbr.rel (0) target = $region9
    $region8: #{multitask_bert_forward.1} parent=1 // pred_region
      _
    $region9: #{multitask_bert_forward.1} parent=1 // pred_fallthru
      _
    // Predicated region
    $region10: #{multitask_bert_forward.1} parent=1 // pred_check
      _
    $region11: #{multitask_bert_forward.1} parent=1 // pred_check_branch
      %14 = sbr.rel (0) target = $region13
    $region12: #{multitask_bert_forward.1} parent=1 // pred_region
      %s16 = ssub.s32 6528, 6528
      %17 = vsyncadd [#allocation3], %s16
      %s18 = sshll.u32 [#allocation2], 4
      %s19 = int_to_ptr.vmem [resolvable:$true] %s18
      %24 = dma.hbm_to_vmem [thread:$0]  %s2, 6528, %s19, [#allocation3], 128, 128, 8
    $region13: #{multitask_bert_forward.1} parent=1 // pred_fallthru
      _
    // Predicated region
    $region14: #{multitask_bert_forward.1} parent=1 // pred_check
      _
    $region15: #{multitask_bert_forward.1} parent=1 // pred_check_branch
      %26 = sbr.rel (0) target = $region17
    $region16: #{multitask_bert_forward.1} parent=1 // pred_region
      %27 = dma.done [#allocation3], 6528
    $region17: #{multitask_bert_forward.1} parent=1 // pred_fallthru
      _
    %v28 = vld [vmem:[#allocation2 + $0x4] sm:$0x1]
    %v29 = vld [vmem:[#allocation2 + $0x5] sm:$0x1]
    %v30 = vld [vmem:[%s1] sm:$0xff]
    %v31 = vld [vmem:[%s1 + $0x8] sm:$0xff]
    %v32 = vld [vmem:[%s1 + $0x10] sm:$0xff]
    %v33 = vld [vmem:[%s1 + $0x18] sm:$0xff]
    %v34 = vld [vmem:[%s0] sm:$0xff]
    %v35 = vld [vmem:[%s0 + $0x8] sm:$0xff]
    %v36 = vld [vmem:[#allocation2] sm:$0x1]
    %v37 = vld [vmem:[#allocation2 + $0x1] sm:$0x1]
    %vm38 = vcmask 261120
    %v39 = vsel %vm38, %v34, 0.0
    %40 = vadd.xlane.f32.xlu0 %v39
    %v41 = vpop.xlane.xlu0 %40
    %v42 = vsel %vm38, %v35, 0.0
    %43 = vadd.xlane.f32.xlu0 %v42
    %v44 = vpop.xlane.xlu0 %43
    %v45 = vrcp.pop 32.0
    %v46 = vmul.f32 %v41, %v45
    %v47 = vmul.f32 %v44, %v45
    %v48 = vsub.f32 %v34, %v46
    %v49 = vsub.f32 %v35, %v47
    %v50 = vmul.f32 %v48, %v48
    %v51 = vmul.f32 %v49, %v49
    %v52 = vsel %vm38, %v50, 0.0
    %53 = vadd.xlane.f32.xlu0 %v52
    %v54 = vpop.xlane.xlu0 %53
    %v55 = vsel %vm38, %v51, 0.0
    %56 = vadd.xlane.f32.xlu0 %v55
    %v57 = vpop.xlane.xlu0 %56
    %v58 = vmul.f32 %v54, %v45
    %v59 = vmul.f32 %v57, %v45
    %v60 = vadd.f32 %v58, 1e-12
    %v61 = vadd.f32 %v59, 1e-12
    %v62 = vrsqrt.pop %v60
    %v63 = vrsqrt.pop %v61
    %v64 = vmul.f32 %v48, %v62
    %v65 = vmul.f32 %v49, %v63
    %v66 = vlaneseq
    %v67 = vshrl.u32 %v66, 7
    %v68 = vsub.s32 0, %v67
    %v69 = vrot.slane %v36, %v68
    %v70 = vmul.f32 %v64, %v69
    %v71 = vmul.f32 %v65, %v69
    %v72 = vlaneseq
    %v73 = vshrl.u32 %v72, 7
    %v74 = vsub.s32 0, %v73
    %v75 = vrot.slane %v37, %v74
    %v76 = vadd.f32 %v70, %v75
    %v77 = vadd.f32 %v71, %v75
    %v78 = vld [vmem:[#allocation2 + $0x48] sm:$0xff]
    %v79 = vld [vmem:[#allocation2 + $0x50] sm:$0xff]
    %v80 = vld [vmem:[#allocation2 + $0x58] sm:$0xff]
    %v81 = vld [vmem:[#allocation2 + $0x60] sm:$0xff]
    %v82 = vld [vmem:[#allocation2 + $0xe8] sm:$0x1]
    %v83 = vlaneseq
    %v84 = vshrl.u32 %v83, 7
    %v85 = vsub.s32 0, %v84
    %v86 = vrot.slane %v82, %v85
    %v88 = vsel %vm38, %v76, 0
    %v91 = vsel %vm38, %v77, 0
    %93 = vmatprep.subr.mxu0 0.0
    %94 = vmatpush1.msra.mxu0 %v78
    %95 = vmatprep.subr.mxu0 0.0
    %96 = vmatpush1.msra.mxu0 %v79
    %97 = vmatprep.subr.mxu0 0.0
    %98 = vmatpush1.msra.mxu0 %v80
    %99 = vmatprep.subr.mxu0 0.0
    %100 = vmatpush1.msra.mxu0 %v81
    %101 = vmatprep.subr.mxu0 0.0
    %102 = vmatpush1.msra.mxu0 0.0
    %103 = vmatprep.subr.mxu0 0.0
    %104 = vmatpush1.msra.mxu0 0.0
    %105 = vmatprep.subr.mxu0 0.0
    %106 = vmatpush1.msra.mxu0 0.0
    %107 = vmatprep.subr.mxu0 0.0
    %108 = vmatpush1.msra.mxu0 0.0
    %109 = vmatprep.subr.mxu0 0.0
    %110 = vmatpush1.msra.mxu0 0.0
    %111 = vmatprep.subr.mxu0 0.0
    %112 = vmatpush1.msra.mxu0 0.0
    %113 = vmatprep.subr.mxu0 0.0
    %114 = vmatpush1.msra.mxu0 0.0
    %115 = vmatprep.subr.mxu0 0.0
    %116 = vmatpush1.msra.mxu0 0.0
    %117 = vmatprep.subr.mxu0 0.0
    %118 = vmatpush1.msra.mxu0 0.0
    %119 = vmatprep.subr.mxu0 0.0
    %120 = vmatpush1.msra.mxu0 0.0
    %121 = vmatprep.subr.mxu0 0.0
    %122 = vmatpush1.msra.mxu0 0.0
    %123 = vmatprep.subr.mxu0 0.0
    %124 = vmatpush1.msra.mxu0 0.0
    %125 = vmatprep.subr.mxu0 0.0
    %126 = vmatpush1.msra.mxu0 0.0
    %127 = vmatprep.subr.mxu0 0.0
    %128 = vmatpush1.msra.mxu0 0.0
    %129 = vmatprep.subr.mxu0 0.0
    %130 = vmatpush1.msra.mxu0 0.0
    %131 = vmatprep.subr.mxu0 0.0
    %132 = vmatpush1.msra.mxu0 0.0
    %133 = vmatprep.subr.mxu0 0.0
    %134 = vmatpush1.msra.mxu0 0.0
    %135 = vmatprep.subr.mxu0 0.0
    %136 = vmatpush1.msra.mxu0 0.0
    %137 = vmatprep.subr.mxu0 0.0
    %138 = vmatpush1.msra.mxu0 0.0
    %139 = vmatprep.subr.mxu0 0.0
    %140 = vmatpush1.msra.mxu0 0.0
    %141 = vmatprep.subr.mxu0 0.0
    %142 = vmatpush1.msra.mxu0 0.0
    %143 = vmatprep.subr.mxu0 0.0
    %144 = vmatpush1.msra.mxu0 0.0
    %145 = vmatprep.subr.mxu0 0.0
    %146 = vmatpush1.msra.mxu0 0.0
    %147 = vmatprep.subr.mxu0 0.0
    %148 = vmatpush1.msra.mxu0 0.0
    %149 = vmatprep.subr.mxu0 0.0
    %150 = vmatpush1.msra.mxu0 0.0
    %151 = vmatprep.subr.mxu0 0.0
    %152 = vmatpush1.msra.mxu0 0.0
    %153 = vmatprep.subr.mxu0 0.0
    %154 = vmatpush1.msra.mxu0 0.0
    %155 = vmatprep.subr.mxu0 0.0
    %156 = vmatpush1.msra.mxu0 0.0
    %157 = vmatprep.mubr.f32.mxu0 0.0
    %158 = vmatmul.mubr.f32.gmra.mrb[0].mxu0 %v88
    %v159 = vpop.f32.mrb[0].mxu0
    %v160 = vadd.f32 %v86, %v159
    %v161 = vpop.f32.mrb[0].mxu0
    %162 = vmatprep.mubr.f32.mxu0 0.0
    %163 = vmatmul.mubr.f32.gmra.mrb[0].mxu0 %v91
    %v164 = vpop.f32.mrb[0].mxu0
    %v165 = vadd.f32 %v86, %v164
    %v166 = vpop.f32.mrb[0].mxu0
    %167 = vdwg.mxu0
    %v168 = vlaneseq
    %v169 = vshrl.u32 %v168, 7
    %v170 = vsub.s32 0, %v169
    %v171 = vrot.slane %v28, %v170
    %v172 = vmul.f32 %v160, %v171
    %v173 = vmul.f32 %v165, %v171
    %v174 = vlaneseq
    %v175 = vshrl.u32 %v174, 7
    %v176 = vsub.s32 0, %v175
    %v177 = vrot.slane %v29, %v176
    %v178 = vmul.f32 %v160, %v177
    %v179 = vmul.f32 %v165, %v177
    %182 = vrot.lane.b32.xlu0 %v160, 96
    %v183 = vpop.permute.xlu0 %182
    %184 = vrot.lane.b32.xlu0 %v165, 96
    %v185 = vpop.permute.xlu0 %184
    %v187 = vsel %vm38, %v172, 0
    %v190 = vsel %vm38, %v173, 0
    %v193 = vsel %vm38, %v178, 0
    %v196 = vsel %vm38, %v179, 0
    %v198 = vsel %vm38, %v183, 0
    %v200 = vsel %vm38, %v185, 0
    %202 = vmatprep.subr.mxu0 0.0
    %203 = vmatpush1.xpose.msra.mxu0 %v198
    %204 = vmatprep.subr.mxu0 0.0
    %205 = vmatpush1.xpose.msra.mxu0 %v200
    %206 = vmatprep.subr.mxu0 0.0
    %207 = vmatpush1.xpose.msra.mxu0 0.0
    %208 = vmatprep.subr.mxu0 0.0
    %209 = vmatpush1.xpose.msra.mxu0 0.0
    %210 = vmatprep.subr.mxu0 0.0
    %211 = vmatpush1.xpose.msra.mxu0 0.0
    %212 = vmatprep.subr.mxu0 0.0
    %213 = vmatpush1.xpose.msra.mxu0 0.0
    %214 = vmatprep.subr.mxu0 0.0
    %215 = vmatpush1.xpose.msra.mxu0 0.0
    %216 = vmatprep.subr.mxu0 0.0
    %217 = vmatpush1.xpose.msra.mxu0 0.0
    %218 = vmatprep.subr.mxu0 0.0
    %219 = vmatpush1.xpose.msra.mxu0 0.0
    %220 = vmatprep.subr.mxu0 0.0
    %221 = vmatpush1.xpose.msra.mxu0 0.0
    %222 = vmatprep.subr.mxu0 0.0
    %223 = vmatpush1.xpose.msra.mxu0 0.0
    %224 = vmatprep.subr.mxu0 0.0
    %225 = vmatpush1.xpose.msra.mxu0 0.0
    %226 = vmatprep.subr.mxu0 0.0
    %227 = vmatpush1.xpose.msra.mxu0 0.0
    %228 = vmatprep.subr.mxu0 0.0
    %229 = vmatpush1.xpose.msra.mxu0 0.0
    %230 = vmatprep.subr.mxu0 0.0
    %231 = vmatpush1.xpose.msra.mxu0 0.0
    %232 = vmatprep.subr.mxu0 0.0
    %233 = vmatpush1.xpose.msra.mxu0 0.0
    %234 = vmatprep.subr.mxu0 0.0
    %235 = vmatpush1.xpose.msra.mxu0 0.0
    %236 = vmatprep.subr.mxu0 0.0
    %237 = vmatpush1.xpose.msra.mxu0 0.0
    %238 = vmatprep.subr.mxu0 0.0
    %239 = vmatpush1.xpose.msra.mxu0 0.0
    %240 = vmatprep.subr.mxu0 0.0
    %241 = vmatpush1.xpose.msra.mxu0 0.0
    %242 = vmatprep.subr.mxu0 0.0
    %243 = vmatpush1.xpose.msra.mxu0 0.0
    %244 = vmatprep.subr.mxu0 0.0
    %245 = vmatpush1.xpose.msra.mxu0 0.0
    %246 = vmatprep.subr.mxu0 0.0
    %247 = vmatpush1.xpose.msra.mxu0 0.0
    %248 = vmatprep.subr.mxu0 0.0
    %249 = vmatpush1.xpose.msra.mxu0 0.0
    %250 = vmatprep.subr.mxu0 0.0
    %251 = vmatpush1.xpose.msra.mxu0 0.0
    %252 = vmatprep.subr.mxu0 0.0
    %253 = vmatpush1.xpose.msra.mxu0 0.0
    %254 = vmatprep.subr.mxu0 0.0
    %255 = vmatpush1.xpose.msra.mxu0 0.0
    %256 = vmatprep.subr.mxu0 0.0
    %257 = vmatpush1.xpose.msra.mxu0 0.0
    %258 = vmatprep.subr.mxu0 0.0
    %259 = vmatpush1.xpose.msra.mxu0 0.0
    %260 = vmatprep.subr.mxu0 0.0
    %261 = vmatpush1.xpose.msra.mxu0 0.0
    %262 = vmatprep.subr.mxu0 0.0
    %263 = vmatpush1.xpose.msra.mxu0 0.0
    %264 = vmatprep.subr.mxu0 0.0
    %265 = vmatpush1.xpose.msra.mxu0 0.0
    %266 = vmatprep.mubr.f32.mxu0 0.0
    %267 = vmatmul.mubr.f32.gmra.mrb[0].mxu0 %v187
    %v268 = vpop.f32.mrb[0].mxu0
    %v269 = vadd.f32 0.0, %v268
    %v270 = vpop.f32.mrb[0].mxu0
    %271 = vmatprep.mubr.f32.mxu0 0.0
    %272 = vmatmul.mubr.f32.gmra.mrb[0].mxu0 %v190
    %v273 = vpop.f32.mrb[0].mxu0
    %v274 = vadd.f32 0.0, %v273
    %v275 = vpop.f32.mrb[0].mxu0
    %276 = vmatprep.mubr.f32.mxu0 0.0
    %277 = vmatmul.mubr.f32.gmra.mrb[0].mxu0 %v193
    %v278 = vpop.f32.mrb[0].mxu0
    %v279 = vadd.f32 0.0, %v278
    %v280 = vpop.f32.mrb[0].mxu0
    %281 = vmatprep.mubr.f32.mxu0 0.0
    %282 = vmatmul.mubr.f32.gmra.mrb[0].mxu0 %v196
    %v283 = vpop.f32.mrb[0].mxu0
    %v284 = vadd.f32 0.0, %v283
    %v285 = vpop.f32.mrb[0].mxu0
    %286 = vdwg.mxu0
    %v287 = vmul.f32 %v269, 0.25
    %v288 = vmul.f32 %v274, 0.25
    %v289 = vmul.f32 %v279, 0.25
    %v290 = vmul.f32 %v284, 0.25
    %v291 = vadd.f32 %v287, %v30
    %v292 = vadd.f32 %v288, %v31
    %v293 = vadd.f32 %v289, %v32
    %v294 = vadd.f32 %v290, %v33
    %vm295 = vcmask 130048
    %v296 = vsel %vm295, %v291, -inf
    %297 = vmax.xlane.f32.xlu0 %v296
    %v298 = vpop.xlane.xlu0 %297
    %v299 = vsel %vm295, %v292, -inf
    %300 = vmax.xlane.f32.xlu0 %v299
    %v301 = vpop.xlane.xlu0 %300
    %v302 = vsel %vm295, %v293, -inf
    %303 = vmax.xlane.f32.xlu0 %v302
    %v304 = vpop.xlane.xlu0 %303
    %v305 = vsel %vm295, %v294, -inf
    %306 = vmax.xlane.f32.xlu0 %v305
    %v307 = vpop.xlane.xlu0 %306
    %v308 = vsub.f32 %v291, %v298
    %v309 = vsub.f32 %v292, %v301
    %v310 = vsub.f32 %v293, %v304
    %v311 = vsub.f32 %v294, %v307
    %v312 = vmul.f32 %v308, 1.442695
    %v313 = vpow.pop %v312
    %v314 = vmul.f32 %v309, 1.442695
    %v315 = vpow.pop %v314
    %v316 = vmul.f32 %v310, 1.442695
    %v317 = vpow.pop %v316
    %v318 = vmul.f32 %v311, 1.442695
    %v319 = vpow.pop %v318
    %v320 = vsel %vm295, %v313, 0.0
    %321 = vadd.xlane.f32.xlu0 %v320
    %v322 = vpop.xlane.xlu0 %321
    %v323 = vsel %vm295, %v315, 0.0
    %324 = vadd.xlane.f32.xlu0 %v323
    %v325 = vpop.xlane.xlu0 %324
    %v326 = vsel %vm295, %v317, 0.0
    %327 = vadd.xlane.f32.xlu0 %v326
    %v328 = vpop.xlane.xlu0 %327
    %v329 = vsel %vm295, %v319, 0.0
    %330 = vadd.xlane.f32.xlu0 %v329
    %v331 = vpop.xlane.xlu0 %330
    %v332 = vrcp.pop %v322
    %v333 = vrcp.pop %v325
    %v334 = vrcp.pop %v328
    %v335 = vrcp.pop %v331
    %v336 = vmul.f32 %v313, %v332
    %v337 = vmul.f32 %v315, %v333
    %v338 = vmul.f32 %v317, %v334
    %v339 = vmul.f32 %v319, %v335
    %340 = vrot.lane.b32.xlu0 %v160, 64
    %v341 = vpop.permute.xlu0 %340
    %342 = vrot.lane.b32.xlu0 %v165, 64
    %v343 = vpop.permute.xlu0 %342
    %v347 = vsel %vm295, %v336, 0
    %v350 = vsel %vm295, %v337, 0
    %v353 = vsel %vm295, %v338, 0
    %v356 = vsel %vm295, %v339, 0
    %358 = vmatprep.subr.mxu0 0.0
    %359 = vmatpush1.msra.mxu0 %v341
    %360 = vmatprep.subr.mxu0 0.0
    %361 = vmatpush1.msra.mxu0 %v343
    %362 = vmatprep.subr.mxu0 0.0
    %363 = vmatpush1.msra.mxu0 0.0
    %364 = vmatprep.subr.mxu0 0.0
    %365 = vmatpush1.msra.mxu0 0.0
    %366 = vmatprep.subr.mxu0 0.0
    %367 = vmatpush1.msra.mxu0 0.0
    %368 = vmatprep.subr.mxu0 0.0
    %369 = vmatpush1.msra.mxu0 0.0
    %370 = vmatprep.subr.mxu0 0.0
    %371 = vmatpush1.msra.mxu0 0.0
    %372 = vmatprep.subr.mxu0 0.0
    %373 = vmatpush1.msra.mxu0 0.0
    %374 = vmatprep.subr.mxu0 0.0
    %375 = vmatpush1.msra.mxu0 0.0
    %376 = vmatprep.subr.mxu0 0.0
    %377 = vmatpush1.msra.mxu0 0.0
    %378 = vmatprep.subr.mxu0 0.0
    %379 = vmatpush1.msra.mxu0 0.0
    %380 = vmatprep.subr.mxu0 0.0
    %381 = vmatpush1.msra.mxu0 0.0
    %382 = vmatprep.subr.mxu0 0.0
    %383 = vmatpush1.msra.mxu0 0.0
    %384 = vmatprep.subr.mxu0 0.0
    %385 = vmatpush1.msra.mxu0 0.0
    %386 = vmatprep.subr.mxu0 0.0
    %387 = vmatpush1.msra.mxu0 0.0
    %388 = vmatprep.subr.mxu0 0.0
    %389 = vmatpush1.msra.mxu0 0.0
    %390 = vmatprep.subr.mxu0 0.0
    %391 = vmatpush1.msra.mxu0 0.0
    %392 = vmatprep.subr.mxu0 0.0
    %393 = vmatpush1.msra.mxu0 0.0
    %394 = vmatprep.subr.mxu0 0.0
    %395 = vmatpush1.msra.mxu0 0.0
    %396 = vmatprep.subr.mxu0 0.0
    %397 = vmatpush1.msra.mxu0 0.0
    %398 = vmatprep.subr.mxu0 0.0
    %399 = vmatpush1.msra.mxu0 0.0
    %400 = vmatprep.subr.mxu0 0.0
    %401 = vmatpush1.msra.mxu0 0.0
    %402 = vmatprep.subr.mxu0 0.0
    %403 = vmatpush1.msra.mxu0 0.0
    %404 = vmatprep.subr.mxu0 0.0
    %405 = vmatpush1.msra.mxu0 0.0
    %406 = vmatprep.subr.mxu0 0.0
    %407 = vmatpush1.msra.mxu0 0.0
    %408 = vmatprep.subr.mxu0 0.0
    %409 = vmatpush1.msra.mxu0 0.0
    %410 = vmatprep.subr.mxu0 0.0
    %411 = vmatpush1.msra.mxu0 0.0
    %412 = vmatprep.subr.mxu0 0.0
    %413 = vmatpush1.msra.mxu0 0.0
    %414 = vmatprep.subr.mxu0 0.0
    %415 = vmatpush1.msra.mxu0 0.0
    %416 = vmatprep.subr.mxu0 0.0
    %417 = vmatpush1.msra.mxu0 0.0
    %418 = vmatprep.subr.mxu0 0.0
    %419 = vmatpush1.msra.mxu0 0.0
    %420 = vmatprep.subr.mxu0 0.0
    %421 = vmatpush1.msra.mxu0 0.0
    %422 = vmatprep.mubr.f32.mxu0 0.0
    %423 = vmatmul.mubr.f32.gmra.mrb[0].mxu0 %v347
    %v424 = vpop.f32.mrb[0].mxu0
    %v425 = vadd.f32 0.0, %v424
    %v426 = vpop.f32.mrb[0].mxu0
    %427 = vmatprep.mubr.f32.mxu0 0.0
    %428 = vmatmul.mubr.f32.gmra.mrb[0].mxu0 %v350
    %v429 = vpop.f32.mrb[0].mxu0
    %v430 = vadd.f32 0.0, %v429
    %v431 = vpop.f32.mrb[0].mxu0
    %432 = vmatprep.mubr.f32.mxu0 0.0
    %433 = vmatmul.mubr.f32.gmra.mrb[0].mxu0 %v353
    %v434 = vpop.f32.mrb[0].mxu0
    %v435 = vadd.f32 0.0, %v434
    %v436 = vpop.f32.mrb[0].mxu0
    %437 = vmatprep.mubr.f32.mxu0 0.0
    %438 = vmatmul.mubr.f32.gmra.mrb[0].mxu0 %v356
    %v439 = vpop.f32.mrb[0].mxu0
    %v440 = vadd.f32 0.0, %v439
    %v441 = vpop.f32.mrb[0].mxu0
    %442 = vdwg.mxu0
    %v443 = vmul.f32 %v425, %v171
    %v444 = vmul.f32 %v430, %v171
    %v445 = vmul.f32 %v435, %v177
    %v446 = vmul.f32 %v440, %v177
    %v447 = vadd.f32 %v443, %v445
    %v448 = vadd.f32 %v444, %v446
    %v449 = vld [vmem:[#allocation2 + $0x68] sm:$0xff]
    %v450 = vld [vmem:[#allocation2 + $0x70] sm:$0xff]
    %v451 = vld [vmem:[#allocation2 + $0x78] sm:$0xff]
    %v452 = vld [vmem:[#allocation2 + $0x80] sm:$0xff]
    %v453 = vld [vmem:[#allocation2 + $0xe9] sm:$0x1]
    %v454 = vlaneseq
    %v455 = vshrl.u32 %v454, 7
    %v456 = vsub.s32 0, %v455
    %v457 = vrot.slane %v453, %v456
    %v459 = vsel %vm38, %v447, 0
    %v462 = vsel %vm38, %v448, 0
    %464 = vmatprep.subr.mxu0 0.0
    %465 = vmatpush1.msra.mxu0 %v449
    %466 = vmatprep.subr.mxu0 0.0
    %467 = vmatpush1.msra.mxu0 %v450
    %468 = vmatprep.subr.mxu0 0.0
    %469 = vmatpush1.msra.mxu0 %v451
    %470 = vmatprep.subr.mxu0 0.0
    %471 = vmatpush1.msra.mxu0 %v452
    %472 = vmatprep.subr.mxu0 0.0
    %473 = vmatpush1.msra.mxu0 0.0
    %474 = vmatprep.subr.mxu0 0.0
    %475 = vmatpush1.msra.mxu0 0.0
    %476 = vmatprep.subr.mxu0 0.0
    %477 = vmatpush1.msra.mxu0 0.0
    %478 = vmatprep.subr.mxu0 0.0
    %479 = vmatpush1.msra.mxu0 0.0
    %480 = vmatprep.subr.mxu0 0.0
    %481 = vmatpush1.msra.mxu0 0.0
    %482 = vmatprep.subr.mxu0 0.0
    %483 = vmatpush1.msra.mxu0 0.0
    %484 = vmatprep.subr.mxu0 0.0
    %485 = vmatpush1.msra.mxu0 0.0
    %486 = vmatprep.subr.mxu0 0.0
    %487 = vmatpush1.msra.mxu0 0.0
    %488 = vmatprep.subr.mxu0 0.0
    %489 = vmatpush1.msra.mxu0 0.0
    %490 = vmatprep.subr.mxu0 0.0
    %491 = vmatpush1.msra.mxu0 0.0
    %492 = vmatprep.subr.mxu0 0.0
    %493 = vmatpush1.msra.mxu0 0.0
    %494 = vmatprep.subr.mxu0 0.0
    %495 = vmatpush1.msra.mxu0 0.0
    %496 = vmatprep.subr.mxu0 0.0
    %497 = vmatpush1.msra.mxu0 0.0
    %498 = vmatprep.subr.mxu0 0.0
    %499 = vmatpush1.msra.mxu0 0.0
    %500 = vmatprep.subr.mxu0 0.0
    %501 = vmatpush1.msra.mxu0 0.0
    %502 = vmatprep.subr.mxu0 0.0
    %503 = vmatpush1.msra.mxu0 0.0
    %504 = vmatprep.subr.mxu0 0.0
    %505 = vmatpush1.msra.mxu0 0.0
    %506 = vmatprep.subr.mxu0 0.0
    %507 = vmatpush1.msra.mxu0 0.0
    %508 = vmatprep.subr.mxu0 0.0
    %509 = vmatpush1.msra.mxu0 0.0
    %510 = vmatprep.subr.mxu0 0.0
    %511 = vmatpush1.msra.mxu0 0.0
    %512 = vmatprep.subr.mxu0 0.0
    %513 = vmatpush1.msra.mxu0 0.0
    %514 = vmatprep.subr.mxu0 0.0
    %515 = vmatpush1.msra.mxu0 0.0
    %516 = vmatprep.subr.mxu0 0.0
    %517 = vmatpush1.msra.mxu0 0.0
    %518 = vmatprep.subr.mxu0 0.0
    %519 = vmatpush1.msra.mxu0 0.0
    %520 = vmatprep.subr.mxu0 0.0
    %521 = vmatpush1.msra.mxu0 0.0
    %522 = vmatprep.subr.mxu0 0.0
    %523 = vmatpush1.msra.mxu0 0.0
    %524 = vmatprep.subr.mxu0 0.0
    %525 = vmatpush1.msra.mxu0 0.0
    %526 = vmatprep.subr.mxu0 0.0
    %527 = vmatpush1.msra.mxu0 0.0
    %528 = vmatprep.mubr.f32.mxu0 0.0
    %529 = vmatmul.mubr.f32.gmra.mrb[0].mxu0 %v459
    %v530 = vpop.f32.mrb[0].mxu0
    %v531 = vadd.f32 %v457, %v530
    %v532 = vpop.f32.mrb[0].mxu0
    %533 = vmatprep.mubr.f32.mxu0 0.0
    %534 = vmatmul.mubr.f32.gmra.mrb[0].mxu0 %v462
    %v535 = vpop.f32.mrb[0].mxu0
    %v536 = vadd.f32 %v457, %v535
    %v537 = vpop.f32.mrb[0].mxu0
    %538 = vdwg.mxu0
    %v539 = vadd.f32 %v531, %v76
    %v540 = vadd.f32 %v536, %v77
    %v541 = vld [vmem:[#allocation2 + $0xea] sm:$0x1]
    %v542 = vld [vmem:[#allocation2 + $0xeb] sm:$0x1]
    %v543 = vsel %vm38, %v539, 0.0
    %544 = vadd.xlane.f32.xlu0 %v543
    %v545 = vpop.xlane.xlu0 %544
    %v546 = vsel %vm38, %v540, 0.0
    %547 = vadd.xlane.f32.xlu0 %v546
    %v548 = vpop.xlane.xlu0 %547
    %v549 = vmul.f32 %v545, %v45
    %v550 = vmul.f32 %v548, %v45
    %v551 = vsub.f32 %v539, %v549
    %v552 = vsub.f32 %v540, %v550
    %v553 = vmul.f32 %v551, %v551
    %v554 = vmul.f32 %v552, %v552
    %v555 = vsel %vm38, %v553, 0.0
    %556 = vadd.xlane.f32.xlu0 %v555
    %v557 = vpop.xlane.xlu0 %556
    %v558 = vsel %vm38, %v554, 0.0
    %559 = vadd.xlane.f32.xlu0 %v558
    %v560 = vpop.xlane.xlu0 %559
    %v561 = vmul.f32 %v557, %v45
    %v562 = vmul.f32 %v560, %v45
    %v563 = vadd.f32 %v561, 1e-12
    %v564 = vadd.f32 %v562, 1e-12
    %v565 = vrsqrt.pop %v563
    %v566 = vrsqrt.pop %v564
    %v567 = vmul.f32 %v551, %v565
    %v568 = vmul.f32 %v552, %v566
    %v569 = vlaneseq
    %v570 = vshrl.u32 %v569, 7
    %v571 = vsub.s32 0, %v570
    %v572 = vrot.slane %v541, %v571
    %v573 = vmul.f32 %v567, %v572
    %v574 = vmul.f32 %v568, %v572
    %v575 = vlaneseq
    %v576 = vshrl.u32 %v575, 7
    %v577 = vsub.s32 0, %v576
    %v578 = vrot.slane %v542, %v577
    %v579 = vadd.f32 %v573, %v578
    %v580 = vadd.f32 %v574, %v578
    %v581 = vld [vmem:[#allocation2 + $0x88] sm:$0xff]
    %v582 = vld [vmem:[#allocation2 + $0x90] sm:$0xff]
    %v583 = vld [vmem:[#allocation2 + $0x98] sm:$0xff]
    %v584 = vld [vmem:[#allocation2 + $0xa0] sm:$0xff]
    %v585 = vld [vmem:[#allocation2 + $0xec] sm:$0x1]
    %v586 = vlaneseq
    %v587 = vshrl.u32 %v586, 7
    %v588 = vsub.s32 0, %v587
    %v589 = vrot.slane %v585, %v588
    %v591 = vsel %vm38, %v579, 0
    %v594 = vsel %vm38, %v580, 0
    %596 = vmatprep.subr.mxu0 0.0
    %597 = vmatpush1.msra.mxu0 %v581
    %598 = vmatprep.subr.mxu0 0.0
    %599 = vmatpush1.msra.mxu0 %v582
    %600 = vmatprep.subr.mxu0 0.0
    %601 = vmatpush1.msra.mxu0 %v583
    %602 = vmatprep.subr.mxu0 0.0
    %603 = vmatpush1.msra.mxu0 %v584
    %604 = vmatprep.subr.mxu0 0.0
    %605 = vmatpush1.msra.mxu0 0.0
    %606 = vmatprep.subr.mxu0 0.0
    %607 = vmatpush1.msra.mxu0 0.0
    %608 = vmatprep.subr.mxu0 0.0
    %609 = vmatpush1.msra.mxu0 0.0
    %610 = vmatprep.subr.mxu0 0.0
    %611 = vmatpush1.msra.mxu0 0.0
    %612 = vmatprep.subr.mxu0 0.0
    %613 = vmatpush1.msra.mxu0 0.0
    %614 = vmatprep.subr.mxu0 0.0
    %615 = vmatpush1.msra.mxu0 0.0
    %616 = vmatprep.subr.mxu0 0.0
    %617 = vmatpush1.msra.mxu0 0.0
    %618 = vmatprep.subr.mxu0 0.0
    %619 = vmatpush1.msra.mxu0 0.0
    %620 = vmatprep.subr.mxu0 0.0
    %621 = vmatpush1.msra.mxu0 0.0
    %622 = vmatprep.subr.mxu0 0.0
    %623 = vmatpush1.msra.mxu0 0.0
    %624 = vmatprep.subr.mxu0 0.0
    %625 = vmatpush1.msra.mxu0 0.0
    %626 = vmatprep.subr.mxu0 0.0
    %627 = vmatpush1.msra.mxu0 0.0
    %628 = vmatprep.subr.mxu0 0.0
    %629 = vmatpush1.msra.mxu0 0.0
    %630 = vmatprep.subr.mxu0 0.0
    %631 = vmatpush1.msra.mxu0 0.0
    %632 = vmatprep.subr.mxu0 0.0
    %633 = vmatpush1.msra.mxu0 0.0
    %634 = vmatprep.subr.mxu0 0.0
    %635 = vmatpush1.msra.mxu0 0.0
    %636 = vmatprep.subr.mxu0 0.0
    %637 = vmatpush1.msra.mxu0 0.0
    %638 = vmatprep.subr.mxu0 0.0
    %639 = vmatpush1.msra.mxu0 0.0
    %640 = vmatprep.subr.mxu0 0.0
    %641 = vmatpush1.msra.mxu0 0.0
    %642 = vmatprep.subr.mxu0 0.0
    %643 = vmatpush1.msra.mxu0 0.0
    %644 = vmatprep.subr.mxu0 0.0
    %645 = vmatpush1.msra.mxu0 0.0
    %646 = vmatprep.subr.mxu0 0.0
    %647 = vmatpush1.msra.mxu0 0.0
    %648 = vmatprep.subr.mxu0 0.0
    %649 = vmatpush1.msra.mxu0 0.0
    %650 = vmatprep.subr.mxu0 0.0
    %651 = vmatpush1.msra.mxu0 0.0
    %652 = vmatprep.subr.mxu0 0.0
    %653 = vmatpush1.msra.mxu0 0.0
    %654 = vmatprep.subr.mxu0 0.0
    %655 = vmatpush1.msra.mxu0 0.0
    %656 = vmatprep.subr.mxu0 0.0
    %657 = vmatpush1.msra.mxu0 0.0
    %658 = vmatprep.subr.mxu0 0.0
    %659 = vmatpush1.msra.mxu0 0.0
    %660 = vmatprep.mubr.f32.mxu0 0.0
    %661 = vmatmul.mubr.f32.gmra.mrb[0].mxu0 %v591
    %v662 = vpop.f32.mrb[0].mxu0
    %v663 = vadd.f32 %v589, %v662
    %v664 = vpop.f32.mrb[0].mxu0
    %665 = vmatprep.mubr.f32.mxu0 0.0
    %666 = vmatmul.mubr.f32.gmra.mrb[0].mxu0 %v594
    %v667 = vpop.f32.mrb[0].mxu0
    %v668 = vadd.f32 %v589, %v667
    %v669 = vpop.f32.mrb[0].mxu0
    %670 = vdwg.mxu0
    %v671 = vmul.f32 %v663, 0.5
    %v672 = vmul.f32 %v668, 0.5
    %v673 = vmul.f32 %v663, 0.044715
    %v674 = vmul.f32 %v668, 0.044715
    %v675 = vmul.f32 %v673, %v663
    %v676 = vmul.f32 %v674, %v668
    %v677 = vmul.f32 %v675, %v663
    %v678 = vmul.f32 %v676, %v668
    %v679 = vadd.f32 %v663, %v677
    %v680 = vadd.f32 %v668, %v678
    %v681 = vmul.f32 %v679, 0.7978846
    %v682 = vmul.f32 %v680, 0.7978846
    %v683 = vtanh.pop %v681
    %v684 = vtanh.pop %v682
    %v685 = vadd.f32 %v683, 1.0
    %v686 = vadd.f32 %v684, 1.0
    %v687 = vmul.f32 %v671, %v685
    %v688 = vmul.f32 %v672, %v686
    %v689 = vld [vmem:[#allocation2 + $0xa8] sm:$0xff]
    %v690 = vld [vmem:[#allocation2 + $0xb0] sm:$0xff]
    %v691 = vld [vmem:[#allocation2 + $0xb8] sm:$0xff]
    %v692 = vld [vmem:[#allocation2 + $0xc0] sm:$0xff]
    %v693 = vld [vmem:[#allocation2 + $0xc8] sm:$0xff]
    %v694 = vld [vmem:[#allocation2 + $0xd0] sm:$0xff]
    %v695 = vld [vmem:[#allocation2 + $0xd8] sm:$0xff]
    %v696 = vld [vmem:[#allocation2 + $0xe0] sm:$0xff]
    %v697 = vld [vmem:[#allocation2 + $0xed] sm:$0x1]
    %v698 = vlaneseq
    %v699 = vshrl.u32 %v698, 7
    %v700 = vsub.s32 0, %v699
    %v701 = vrot.slane %v697, %v700
    %vm702 = vcmask 523264
    %v704 = vsel %vm702, %v687, 0
    %v707 = vsel %vm702, %v688, 0
    %709 = vmatprep.subr.mxu0 0.0
    %710 = vmatpush1.msra.mxu0 %v689
    %711 = vmatprep.subr.mxu0 0.0
    %712 = vmatpush1.msra.mxu0 %v690
    %713 = vmatprep.subr.mxu0 0.0
    %714 = vmatpush1.msra.mxu0 %v691
    %715 = vmatprep.subr.mxu0 0.0
    %716 = vmatpush1.msra.mxu0 %v692
    %717 = vmatprep.subr.mxu0 0.0
    %718 = vmatpush1.msra.mxu0 %v693
    %719 = vmatprep.subr.mxu0 0.0
    %720 = vmatpush1.msra.mxu0 %v694
    %721 = vmatprep.subr.mxu0 0.0
    %722 = vmatpush1.msra.mxu0 %v695
    %723 = vmatprep.subr.mxu0 0.0
    %724 = vmatpush1.msra.mxu0 %v696
    %725 = vmatprep.subr.mxu0 0.0
    %726 = vmatpush1.msra.mxu0 0.0
    %727 = vmatprep.subr.mxu0 0.0
    %728 = vmatpush1.msra.mxu0 0.0
    %729 = vmatprep.subr.mxu0 0.0
    %730 = vmatpush1.msra.mxu0 0.0
    %731 = vmatprep.subr.mxu0 0.0
    %732 = vmatpush1.msra.mxu0 0.0
    %733 = vmatprep.subr.mxu0 0.0
    %734 = vmatpush1.msra.mxu0 0.0
    %735 = vmatprep.subr.mxu0 0.0
    %736 = vmatpush1.msra.mxu0 0.0
    %737 = vmatprep.subr.mxu0 0.0
    %738 = vmatpush1.msra.mxu0 0.0
    %739 = vmatprep.subr.mxu0 0.0
    %740 = vmatpush1.msra.mxu0 0.0
    %741 = vmatprep.subr.mxu0 0.0
    %742 = vmatpush1.msra.mxu0 0.0
    %743 = vmatprep.subr.mxu0 0.0
    %744 = vmatpush1.msra.mxu0 0.0
    %745 = vmatprep.subr.mxu0 0.0
    %746 = vmatpush1.msra.mxu0 0.0
    %747 = vmatprep.subr.mxu0 0.0
    %748 = vmatpush1.msra.mxu0 0.0
    %749 = vmatprep.subr.mxu0 0.0
    %750 = vmatpush1.msra.mxu0 0.0
    %751 = vmatprep.subr.mxu0 0.0
    %752 = vmatpush1.msra.mxu0 0.0
    %753 = vmatprep.subr.mxu0 0.0
    %754 = vmatpush1.msra.mxu0 0.0
    %755 = vmatprep.subr.mxu0 0.0
    %756 = vmatpush1.msra.mxu0 0.0
    %757 = vmatprep.subr.mxu0 0.0
    %758 = vmatpush1.msra.mxu0 0.0
    %759 = vmatprep.subr.mxu0 0.0
    %760 = vmatpush1.msra.mxu0 0.0
    %761 = vmatprep.subr.mxu0 0.0
    %762 = vmatpush1.msra.mxu0 0.0
    %763 = vmatprep.subr.mxu0 0.0
    %764 = vmatpush1.msra.mxu0 0.0
    %765 = vmatprep.subr.mxu0 0.0
    %766 = vmatpush1.msra.mxu0 0.0
    %767 = vmatprep.subr.mxu0 0.0
    %768 = vmatpush1.msra.mxu0 0.0
    %769 = vmatprep.subr.mxu0 0.0
    %770 = vmatpush1.msra.mxu0 0.0
    %771 = vmatprep.subr.mxu0 0.0
    %772 = vmatpush1.msra.mxu0 0.0
    %773 = vmatprep.mubr.f32.mxu0 0.0
    %774 = vmatmul.mubr.f32.gmra.mrb[0].mxu0 %v704
    %v775 = vpop.f32.mrb[0].mxu0
    %v776 = vadd.f32 %v701, %v775
    %v777 = vpop.f32.mrb[0].mxu0
    %778 = vmatprep.mubr.f32.mxu0 0.0
    %779 = vmatmul.mubr.f32.gmra.mrb[0].mxu0 %v707
    %v780 = vpop.f32.mrb[0].mxu0
    %v781 = vadd.f32 %v701, %v780
    %v782 = vpop.f32.mrb[0].mxu0
    %783 = vdwg.mxu0
    %v784 = vadd.f32 %v776, %v579
    %v785 = vadd.f32 %v781, %v580
    %v786 = vld [vmem:[#allocation2 + $0xee] sm:$0x1]
    %v787 = vld [vmem:[#allocation2 + $0xef] sm:$0x1]
    %v788 = vsel %vm38, %v784, 0.0
    %789 = vadd.xlane.f32.xlu0 %v788
    %v790 = vpop.xlane.xlu0 %789
    %v791 = vsel %vm38, %v785, 0.0
    %792 = vadd.xlane.f32.xlu0 %v791
    %v793 = vpop.xlane.xlu0 %792
    %v794 = vmul.f32 %v790, %v45
    %v795 = vmul.f32 %v793, %v45
    %v796 = vsub.f32 %v784, %v794
    %v797 = vsub.f32 %v785, %v795
    %v798 = vmul.f32 %v796, %v796
    %v799 = vmul.f32 %v797, %v797
    %v800 = vsel %vm38, %v798, 0.0
    %801 = vadd.xlane.f32.xlu0 %v800
    %v802 = vpop.xlane.xlu0 %801
    %v803 = vsel %vm38, %v799, 0.0
    %804 = vadd.xlane.f32.xlu0 %v803
    %v805 = vpop.xlane.xlu0 %804
    %v806 = vmul.f32 %v802, %v45
    %v807 = vmul.f32 %v805, %v45
    %v808 = vadd.f32 %v806, 1e-12
    %v809 = vadd.f32 %v807, 1e-12
    %v810 = vrsqrt.pop %v808
    %v811 = vrsqrt.pop %v809
    %v812 = vmul.f32 %v796, %v810
    %v813 = vmul.f32 %v797, %v811
    %v814 = vlaneseq
    %v815 = vshrl.u32 %v814, 7
    %v816 = vsub.s32 0, %v815
    %v817 = vrot.slane %v786, %v816
    %v818 = vmul.f32 %v812, %v817
    %v819 = vmul.f32 %v813, %v817
    %v820 = vlaneseq
    %v821 = vshrl.u32 %v820, 7
    %v822 = vsub.s32 0, %v821
    %v823 = vrot.slane %v787, %v822
    %v824 = vadd.f32 %v818, %v823
    %v825 = vadd.f32 %v819, %v823
    %v826 = vld [vmem:[#allocation2 + $0xf0] sm:$0xff]
    %v827 = vld [vmem:[#allocation2 + $0xf8] sm:$0xff]
    %v828 = vld [vmem:[#allocation2 + $0x100] sm:$0xff]
    %v829 = vld [vmem:[#allocation2 + $0x108] sm:$0xff]
    %v830 = vld [vmem:[#allocation2 + $0x190] sm:$0x1]
    %v831 = vlaneseq
    %v832 = vshrl.u32 %v831, 7
    %v833 = vsub.s32 0, %v832
    %v834 = vrot.slane %v830, %v833
    %v836 = vsel %vm38, %v824, 0
    %v839 = vsel %vm38, %v825, 0
    %841 = vmatprep.subr.mxu0 0.0
    %842 = vmatpush1.msra.mxu0 %v826
    %843 = vmatprep.subr.mxu0 0.0
    %844 = vmatpush1.msra.mxu0 %v827
    %845 = vmatprep.subr.mxu0 0.0
    %846 = vmatpush1.msra.mxu0 %v828
    %847 = vmatprep.subr.mxu0 0.0
    %848 = vmatpush1.msra.mxu0 %v829
    %849 = vmatprep.subr.mxu0 0.0
    %850 = vmatpush1.msra.mxu0 0.0
    %851 = vmatprep.subr.mxu0 0.0
    %852 = vmatpush1.msra.mxu0 0.0
    %853 = vmatprep.subr.mxu0 0.0
    %854 = vmatpush1.msra.mxu0 0.0
    %855 = vmatprep.subr.mxu0 0.0
    %856 = vmatpush1.msra.mxu0 0.0
    %857 = vmatprep.subr.mxu0 0.0
    %858 = vmatpush1.msra.mxu0 0.0
    %859 = vmatprep.subr.mxu0 0.0
    %860 = vmatpush1.msra.mxu0 0.0
    %861 = vmatprep.subr.mxu0 0.0
    %862 = vmatpush1.msra.mxu0 0.0
    %863 = vmatprep.subr.mxu0 0.0
    %864 = vmatpush1.msra.mxu0 0.0
    %865 = vmatprep.subr.mxu0 0.0
    %866 = vmatpush1.msra.mxu0 0.0
    %867 = vmatprep.subr.mxu0 0.0
    %868 = vmatpush1.msra.mxu0 0.0
    %869 = vmatprep.subr.mxu0 0.0
    %870 = vmatpush1.msra.mxu0 0.0
    %871 = vmatprep.subr.mxu0 0.0
    %872 = vmatpush1.msra.mxu0 0.0
    %873 = vmatprep.subr.mxu0 0.0
    %874 = vmatpush1.msra.mxu0 0.0
    %875 = vmatprep.subr.mxu0 0.0
    %876 = vmatpush1.msra.mxu0 0.0
    %877 = vmatprep.subr.mxu0 0.0
    %878 = vmatpush1.msra.mxu0 0.0
    %879 = vmatprep.subr.mxu0 0.0
    %880 = vmatpush1.msra.mxu0 0.0
    %881 = vmatprep.subr.mxu0 0.0
    %882 = vmatpush1.msra.mxu0 0.0
    %883 = vmatprep.subr.mxu0 0.0
    %884 = vmatpush1.msra.mxu0 0.0
    %885 = vmatprep.subr.mxu0 0.0
    %886 = vmatpush1.msra.mxu0 0.0
    %887 = vmatprep.subr.mxu0 0.0
    %888 = vmatpush1.msra.mxu0 0.0
    %889 = vmatprep.subr.mxu0 0.0
    %890 = vmatpush1.msra.mxu0 0.0
    %891 = vmatprep.subr.mxu0 0.0
    %892 = vmatpush1.msra.mxu0 0.0
    %893 = vmatprep.subr.mxu0 0.0
    %894 = vmatpush1.msra.mxu0 0.0
    %895 = vmatprep.subr.mxu0 0.0
    %896 = vmatpush1.msra.mxu0 0.0
    %897 = vmatprep.subr.mxu0 0.0
    %898 = vmatpush1.msra.mxu0 0.0
    %899 = vmatprep.subr.mxu0 0.0
    %900 = vmatpush1.msra.mxu0 0.0
    %901 = vmatprep.subr.mxu0 0.0
    %902 = vmatpush1.msra.mxu0 0.0
    %903 = vmatprep.subr.mxu0 0.0
    %904 = vmatpush1.msra.mxu0 0.0
    %905 = vmatprep.mubr.f32.mxu0 0.0
    %906 = vmatmul.mubr.f32.gmra.mrb[0].mxu0 %v836
    %v907 = vpop.f32.mrb[0].mxu0
    %v908 = vadd.f32 %v834, %v907
    %v909 = vpop.f32.mrb[0].mxu0
    %910 = vmatprep.mubr.f32.mxu0 0.0
    %911 = vmatmul.mubr.f32.gmra.mrb[0].mxu0 %v839
    %v912 = vpop.f32.mrb[0].mxu0
    %v913 = vadd.f32 %v834, %v912
    %v914 = vpop.f32.mrb[0].mxu0
    %915 = vdwg.mxu0
    %v916 = vmul.f32 %v908, %v171
    %v917 = vmul.f32 %v913, %v171
    %v918 = vmul.f32 %v908, %v177
    %v919 = vmul.f32 %v913, %v177
    %922 = vrot.lane.b32.xlu0 %v908, 96
    %v923 = vpop.permute.xlu0 %922
    %924 = vrot.lane.b32.xlu0 %v913, 96
    %v925 = vpop.permute.xlu0 %924
    %v927 = vsel %vm38, %v916, 0
    %v930 = vsel %vm38, %v917, 0
    %v933 = vsel %vm38, %v918, 0
    %v936 = vsel %vm38, %v919, 0
    %v938 = vsel %vm38, %v923, 0
    %v940 = vsel %vm38, %v925, 0
    %942 = vmatprep.subr.mxu0 0.0
    %943 = vmatpush1.xpose.msra.mxu0 %v938
    %944 = vmatprep.subr.mxu0 0.0
    %945 = vmatpush1.xpose.msra.mxu0 %v940
    %946 = vmatprep.subr.mxu0 0.0
    %947 = vmatpush1.xpose.msra.mxu0 0.0
    %948 = vmatprep.subr.mxu0 0.0
    %949 = vmatpush1.xpose.msra.mxu0 0.0
    %950 = vmatprep.subr.mxu0 0.0
    %951 = vmatpush1.xpose.msra.mxu0 0.0
    %952 = vmatprep.subr.mxu0 0.0
    %953 = vmatpush1.xpose.msra.mxu0 0.0
    %954 = vmatprep.subr.mxu0 0.0
    %955 = vmatpush1.xpose.msra.mxu0 0.0
    %956 = vmatprep.subr.mxu0 0.0
    %957 = vmatpush1.xpose.msra.mxu0 0.0
    %958 = vmatprep.subr.mxu0 0.0
    %959 = vmatpush1.xpose.msra.mxu0 0.0
    %960 = vmatprep.subr.mxu0 0.0
    %961 = vmatpush1.xpose.msra.mxu0 0.0
    %962 = vmatprep.subr.mxu0 0.0
    %963 = vmatpush1.xpose.msra.mxu0 0.0
    %964 = vmatprep.subr.mxu0 0.0
    %965 = vmatpush1.xpose.msra.mxu0 0.0
    %966 = vmatprep.subr.mxu0 0.0
    %967 = vmatpush1.xpose.msra.mxu0 0.0
    %968 = vmatprep.subr.mxu0 0.0
    %969 = vmatpush1.xpose.msra.mxu0 0.0
    %970 = vmatprep.subr.mxu0 0.0
    %971 = vmatpush1.xpose.msra.mxu0 0.0
    %972 = vmatprep.subr.mxu0 0.0
    %973 = vmatpush1.xpose.msra.mxu0 0.0
    %974 = vmatprep.subr.mxu0 0.0
    %975 = vmatpush1.xpose.msra.mxu0 0.0
    %976 = vmatprep.subr.mxu0 0.0
    %977 = vmatpush1.xpose.msra.mxu0 0.0
    %978 = vmatprep.subr.mxu0 0.0
    %979 = vmatpush1.xpose.msra.mxu0 0.0
    %980 = vmatprep.subr.mxu0 0.0
    %981 = vmatpush1.xpose.msra.mxu0 0.0
    %982 = vmatprep.subr.mxu0 0.0
    %983 = vmatpush1.xpose.msra.mxu0 0.0
    %984 = vmatprep.subr.mxu0 0.0
    %985 = vmatpush1.xpose.msra.mxu0 0.0
    %986 = vmatprep.subr.mxu0 0.0
    %987 = vmatpush1.xpose.msra.mxu0 0.0
    %988 = vmatprep.subr.mxu0 0.0
    %989 = vmatpush1.xpose.msra.mxu0 0.0
    %990 = vmatprep.subr.mxu0 0.0
    %991 = vmatpush1.xpose.msra.mxu0 0.0
    %992 = vmatprep.subr.mxu0 0.0
    %993 = vmatpush1.xpose.msra.mxu0 0.0
    %994 = vmatprep.subr.mxu0 0.0
    %995 = vmatpush1.xpose.msra.mxu0 0.0
    %996 = vmatprep.subr.mxu0 0.0
    %997 = vmatpush1.xpose.msra.mxu0 0.0
    %998 = vmatprep.subr.mxu0 0.0
    %999 = vmatpush1.xpose.msra.mxu0 0.0
    %1000 = vmatprep.subr.mxu0 0.0
    %1001 = vmatpush1.xpose.msra.mxu0 0.0
    %1002 = vmatprep.subr.mxu0 0.0
    %1003 = vmatpush1.xpose.msra.mxu0 0.0
    %1004 = vmatprep.subr.mxu0 0.0
    %1005 = vmatpush1.xpose.msra.mxu0 0.0
    %1006 = vmatprep.mubr.f32.mxu0 0.0
    %1007 = vmatmul.mubr.f32.gmra.mrb[0].mxu0 %v927
    %v1008 = vpop.f32.mrb[0].mxu0
    %v1009 = vadd.f32 0.0, %v1008
    %v1010 = vpop.f32.mrb[0].mxu0
    %1011 = vmatprep.mubr.f32.mxu0 0.0
    %1012 = vmatmul.mubr.f32.gmra.mrb[0].mxu0 %v930
    %v1013 = vpop.f32.mrb[0].mxu0
    %v1014 = vadd.f32 0.0, %v1013
    %v1015 = vpop.f32.mrb[0].mxu0
    %1016 = vmatprep.mubr.f32.mxu0 0.0
    %1017 = vmatmul.mubr.f32.gmra.mrb[0].mxu0 %v933
    %v1018 = vpop.f32.mrb[0].mxu0
    %v1019 = vadd.f32 0.0, %v1018
    %v1020 = vpop.f32.mrb[0].mxu0
    %1021 = vmatprep.mubr.f32.mxu0 0.0
    %1022 = vmatmul.mubr.f32.gmra.mrb[0].mxu0 %v936
    %v1023 = vpop.f32.mrb[0].mxu0
    %v1024 = vadd.f32 0.0, %v1023
    %v1025 = vpop.f32.mrb[0].mxu0
    %1026 = vdwg.mxu0
    %v1027 = vmul.f32 %v1009, 0.25
    %v1028 = vmul.f32 %v1014, 0.25
    %v1029 = vmul.f32 %v1019, 0.25
    %v1030 = vmul.f32 %v1024, 0.25
    %v1031 = vadd.f32 %v1027, %v30
    %v1032 = vadd.f32 %v1028, %v31
    %v1033 = vadd.f32 %v1029, %v32
    %v1034 = vadd.f32 %v1030, %v33
    %v1035 = vsel %vm295, %v1031, -inf
    %1036 = vmax.xlane.f32.xlu0 %v1035
    %v1037 = vpop.xlane.xlu0 %1036
    %v1038 = vsel %vm295, %v1032, -inf
    %1039 = vmax.xlane.f32.xlu0 %v1038
    %v1040 = vpop.xlane.xlu0 %1039
    %v1041 = vsel %vm295, %v1033, -inf
    %1042 = vmax.xlane.f32.xlu0 %v1041
    %v1043 = vpop.xlane.xlu0 %1042
    %v1044 = vsel %vm295, %v1034, -inf
    %1045 = vmax.xlane.f32.xlu0 %v1044
    %v1046 = vpop.xlane.xlu0 %1045
    %v1047 = vsub.f32 %v1031, %v1037
    %v1048 = vsub.f32 %v1032, %v1040
    %v1049 = vsub.f32 %v1033, %v1043
    %v1050 = vsub.f32 %v1034, %v1046
    %v1051 = vmul.f32 %v1047, 1.442695
    %v1052 = vpow.pop %v1051
    %v1053 = vmul.f32 %v1048, 1.442695
    %v1054 = vpow.pop %v1053
    %v1055 = vmul.f32 %v1049, 1.442695
    %v1056 = vpow.pop %v1055
    %v1057 = vmul.f32 %v1050, 1.442695
    %v1058 = vpow.pop %v1057
    %v1059 = vsel %vm295, %v1052, 0.0
    %1060 = vadd.xlane.f32.xlu0 %v1059
    %v1061 = vpop.xlane.xlu0 %1060
    %v1062 = vsel %vm295, %v1054, 0.0
    %1063 = vadd.xlane.f32.xlu0 %v1062
    %v1064 = vpop.xlane.xlu0 %1063
    %v1065 = vsel %vm295, %v1056, 0.0
    %1066 = vadd.xlane.f32.xlu0 %v1065
    %v1067 = vpop.xlane.xlu0 %1066
    %v1068 = vsel %vm295, %v1058, 0.0
    %1069 = vadd.xlane.f32.xlu0 %v1068
    %v1070 = vpop.xlane.xlu0 %1069
    %v1071 = vrcp.pop %v1061
    %v1072 = vrcp.pop %v1064
    %v1073 = vrcp.pop %v1067
    %v1074 = vrcp.pop %v1070
    %v1075 = vmul.f32 %v1052, %v1071
    %v1076 = vmul.f32 %v1054, %v1072
    %v1077 = vmul.f32 %v1056, %v1073
    %v1078 = vmul.f32 %v1058, %v1074
    %1079 = vrot.lane.b32.xlu0 %v908, 64
    %v1080 = vpop.permute.xlu0 %1079
    %1081 = vrot.lane.b32.xlu0 %v913, 64
    %v1082 = vpop.permute.xlu0 %1081
    %v1086 = vsel %vm295, %v1075, 0
    %v1089 = vsel %vm295, %v1076, 0
    %v1092 = vsel %vm295, %v1077, 0
    %v1095 = vsel %vm295, %v1078, 0
    %1097 = vmatprep.subr.mxu0 0.0
    %1098 = vmatpush1.msra.mxu0 %v1080
    %1099 = vmatprep.subr.mxu0 0.0
    %1100 = vmatpush1.msra.mxu0 %v1082
    %1101 = vmatprep.subr.mxu0 0.0
    %1102 = vmatpush1.msra.mxu0 0.0
    %1103 = vmatprep.subr.mxu0 0.0
    %1104 = vmatpush1.msra.mxu0 0.0
    %1105 = vmatprep.subr.mxu0 0.0
    %1106 = vmatpush1.msra.mxu0 0.0
    %1107 = vmatprep.subr.mxu0 0.0
    %1108 = vmatpush1.msra.mxu0 0.0
    %1109 = vmatprep.subr.mxu0 0.0
    %1110 = vmatpush1.msra.mxu0 0.0
    %1111 = vmatprep.subr.mxu0 0.0
    %1112 = vmatpush1.msra.mxu0 0.0
    %1113 = vmatprep.subr.mxu0 0.0
    %1114 = vmatpush1.msra.mxu0 0.0
    %1115 = vmatprep.subr.mxu0 0.0
    %1116 = vmatpush1.msra.mxu0 0.0
    %1117 = vmatprep.subr.mxu0 0.0
    %1118 = vmatpush1.msra.mxu0 0.0
    %1119 = vmatprep.subr.mxu0 0.0
    %1120 = vmatpush1.msra.mxu0 0.0
    %1121 = vmatprep.subr.mxu0 0.0
    %1122 = vmatpush1.msra.mxu0 0.0
    %1123 = vmatprep.subr.mxu0 0.0
    %1124 = vmatpush1.msra.mxu0 0.0
    %1125 = vmatprep.subr.mxu0 0.0
    %1126 = vmatpush1.msra.mxu0 0.0
    %1127 = vmatprep.subr.mxu0 0.0
    %1128 = vmatpush1.msra.mxu0 0.0
    %1129 = vmatprep.subr.mxu0 0.0
    %1130 = vmatpush1.msra.mxu0 0.0
    %1131 = vmatprep.subr.mxu0 0.0
    %1132 = vmatpush1.msra.mxu0 0.0
    %1133 = vmatprep.subr.mxu0 0.0
    %1134 = vmatpush1.msra.mxu0 0.0
    %1135 = vmatprep.subr.mxu0 0.0
    %1136 = vmatpush1.msra.mxu0 0.0
    %1137 = vmatprep.subr.mxu0 0.0
    %1138 = vmatpush1.msra.mxu0 0.0
    %1139 = vmatprep.subr.mxu0 0.0
    %1140 = vmatpush1.msra.mxu0 0.0
    %1141 = vmatprep.subr.mxu0 0.0
    %1142 = vmatpush1.msra.mxu0 0.0
    %1143 = vmatprep.subr.mxu0 0.0
    %1144 = vmatpush1.msra.mxu0 0.0
    %1145 = vmatprep.subr.mxu0 0.0
    %1146 = vmatpush1.msra.mxu0 0.0
    %1147 = vmatprep.subr.mxu0 0.0
    %1148 = vmatpush1.msra.mxu0 0.0
    %1149 = vmatprep.subr.mxu0 0.0
    %1150 = vmatpush1.msra.mxu0 0.0
    %1151 = vmatprep.subr.mxu0 0.0
    %1152 = vmatpush1.msra.mxu0 0.0
    %1153 = vmatprep.subr.mxu0 0.0
    %1154 = vmatpush1.msra.mxu0 0.0
    %1155 = vmatprep.subr.mxu0 0.0
    %1156 = vmatpush1.msra.mxu0 0.0
    %1157 = vmatprep.subr.mxu0 0.0
    %1158 = vmatpush1.msra.mxu0 0.0
    %1159 = vmatprep.subr.mxu0 0.0
    %1160 = vmatpush1.msra.mxu0 0.0
    %1161 = vmatprep.mubr.f32.mxu0 0.0
    %1162 = vmatmul.mubr.f32.gmra.mrb[0].mxu0 %v1086
    %v1163 = vpop.f32.mrb[0].mxu0
    %v1164 = vadd.f32 0.0, %v1163
    %v1165 = vpop.f32.mrb[0].mxu0
    %1166 = vmatprep.mubr.f32.mxu0 0.0
    %1167 = vmatmul.mubr.f32.gmra.mrb[0].mxu0 %v1089
    %v1168 = vpop.f32.mrb[0].mxu0
    %v1169 = vadd.f32 0.0, %v1168
    %v1170 = vpop.f32.mrb[0].mxu0
    %1171 = vmatprep.mubr.f32.mxu0 0.0
    %1172 = vmatmul.mubr.f32.gmra.mrb[0].mxu0 %v1092
    %v1173 = vpop.f32.mrb[0].mxu0
    %v1174 = vadd.f32 0.0, %v1173
    %v1175 = vpop.f32.mrb[0].mxu0
    %1176 = vmatprep.mubr.f32.mxu0 0.0
    %1177 = vmatmul.mubr.f32.gmra.mrb[0].mxu0 %v1095
    %v1178 = vpop.f32.mrb[0].mxu0
    %v1179 = vadd.f32 0.0, %v1178
    %v1180 = vpop.f32.mrb[0].mxu0
    %1181 = vdwg.mxu0
    %v1182 = vmul.f32 %v1164, %v171
    %v1183 = vmul.f32 %v1169, %v171
    %v1184 = vmul.f32 %v1174, %v177
    %v1185 = vmul.f32 %v1179, %v177
    %v1186 = vadd.f32 %v1182, %v1184
    %v1187 = vadd.f32 %v1183, %v1185
    %v1188 = vld [vmem:[#allocation2 + $0x110] sm:$0xff]
    %v1189 = vld [vmem:[#allocation2 + $0x118] sm:$0xff]
    %v1190 = vld [vmem:[#allocation2 + $0x120] sm:$0xff]
    %v1191 = vld [vmem:[#allocation2 + $0x128] sm:$0xff]
    %v1192 = vld [vmem:[#allocation2 + $0x191] sm:$0x1]
    %v1193 = vlaneseq
    %v1194 = vshrl.u32 %v1193, 7
    %v1195 = vsub.s32 0, %v1194
    %v1196 = vrot.slane %v1192, %v1195
    %v1198 = vsel %vm38, %v1186, 0
    %v1201 = vsel %vm38, %v1187, 0
    %1203 = vmatprep.subr.mxu0 0.0
    %1204 = vmatpush1.msra.mxu0 %v1188
    %1205 = vmatprep.subr.mxu0 0.0
    %1206 = vmatpush1.msra.mxu0 %v1189
    %1207 = vmatprep.subr.mxu0 0.0
    %1208 = vmatpush1.msra.mxu0 %v1190
    %1209 = vmatprep.subr.mxu0 0.0
    %1210 = vmatpush1.msra.mxu0 %v1191
    %1211 = vmatprep.subr.mxu0 0.0
    %1212 = vmatpush1.msra.mxu0 0.0
    %1213 = vmatprep.subr.mxu0 0.0
    %1214 = vmatpush1.msra.mxu0 0.0
    %1215 = vmatprep.subr.mxu0 0.0
    %1216 = vmatpush1.msra.mxu0 0.0
    %1217 = vmatprep.subr.mxu0 0.0
    %1218 = vmatpush1.msra.mxu0 0.0
    %1219 = vmatprep.subr.mxu0 0.0
    %1220 = vmatpush1.msra.mxu0 0.0
    %1221 = vmatprep.subr.mxu0 0.0
    %1222 = vmatpush1.msra.mxu0 0.0
    %1223 = vmatprep.subr.mxu0 0.0
    %1224 = vmatpush1.msra.mxu0 0.0
    %1225 = vmatprep.subr.mxu0 0.0
    %1226 = vmatpush1.msra.mxu0 0.0
    %1227 = vmatprep.subr.mxu0 0.0
    %1228 = vmatpush1.msra.mxu0 0.0
    %1229 = vmatprep.subr.mxu0 0.0
    %1230 = vmatpush1.msra.mxu0 0.0
    %1231 = vmatprep.subr.mxu0 0.0
    %1232 = vmatpush1.msra.mxu0 0.0
    %1233 = vmatprep.subr.mxu0 0.0
    %1234 = vmatpush1.msra.mxu0 0.0
    %1235 = vmatprep.subr.mxu0 0.0
    %1236 = vmatpush1.msra.mxu0 0.0
    %1237 = vmatprep.subr.mxu0 0.0
    %1238 = vmatpush1.msra.mxu0 0.0
    %1239 = vmatprep.subr.mxu0 0.0
    %1240 = vmatpush1.msra.mxu0 0.0
    %1241 = vmatprep.subr.mxu0 0.0
    %1242 = vmatpush1.msra.mxu0 0.0
    %1243 = vmatprep.subr.mxu0 0.0
    %1244 = vmatpush1.msra.mxu0 0.0
    %1245 = vmatprep.subr.mxu0 0.0
    %1246 = vmatpush1.msra.mxu0 0.0
    %1247 = vmatprep.subr.mxu0 0.0
    %1248 = vmatpush1.msra.mxu0 0.0
    %1249 = vmatprep.subr.mxu0 0.0
    %1250 = vmatpush1.msra.mxu0 0.0
    %1251 = vmatprep.subr.mxu0 0.0
    %1252 = vmatpush1.msra.mxu0 0.0
    %1253 = vmatprep.subr.mxu0 0.0
    %1254 = vmatpush1.msra.mxu0 0.0
    %1255 = vmatprep.subr.mxu0 0.0
    %1256 = vmatpush1.msra.mxu0 0.0
    %1257 = vmatprep.subr.mxu0 0.0
    %1258 = vmatpush1.msra.mxu0 0.0
    %1259 = vmatprep.subr.mxu0 0.0
    %1260 = vmatpush1.msra.mxu0 0.0
    %1261 = vmatprep.subr.mxu0 0.0
    %1262 = vmatpush1.msra.mxu0 0.0
    %1263 = vmatprep.subr.mxu0 0.0
    %1264 = vmatpush1.msra.mxu0 0.0
    %1265 = vmatprep.subr.mxu0 0.0
    %1266 = vmatpush1.msra.mxu0 0.0
    %1267 = vmatprep.mubr.f32.mxu0 0.0
    %1268 = vmatmul.mubr.f32.gmra.mrb[0].mxu0 %v1198
    %v1269 = vpop.f32.mrb[0].mxu0
    %v1270 = vadd.f32 %v1196, %v1269
    %v1271 = vpop.f32.mrb[0].mxu0
    %1272 = vmatprep.mubr.f32.mxu0 0.0
    %1273 = vmatmul.mubr.f32.gmra.mrb[0].mxu0 %v1201
    %v1274 = vpop.f32.mrb[0].mxu0
    %v1275 = vadd.f32 %v1196, %v1274
    %v1276 = vpop.f32.mrb[0].mxu0
    %1277 = vdwg.mxu0
    %v1278 = vadd.f32 %v1270, %v824
    %v1279 = vadd.f32 %v1275, %v825
    %v1280 = vld [vmem:[#allocation2 + $0x192] sm:$0x1]
    %v1281 = vld [vmem:[#allocation2 + $0x193] sm:$0x1]
    %v1282 = vsel %vm38, %v1278, 0.0
    %1283 = vadd.xlane.f32.xlu0 %v1282
    %v1284 = vpop.xlane.xlu0 %1283
    %v1285 = vsel %vm38, %v1279, 0.0
    %1286 = vadd.xlane.f32.xlu0 %v1285
    %v1287 = vpop.xlane.xlu0 %1286
    %v1288 = vmul.f32 %v1284, %v45
    %v1289 = vmul.f32 %v1287, %v45
    %v1290 = vsub.f32 %v1278, %v1288
    %v1291 = vsub.f32 %v1279, %v1289
    %v1292 = vmul.f32 %v1290, %v1290
    %v1293 = vmul.f32 %v1291, %v1291
    %v1294 = vsel %vm38, %v1292, 0.0
    %1295 = vadd.xlane.f32.xlu0 %v1294
    %v1296 = vpop.xlane.xlu0 %1295
    %v1297 = vsel %vm38, %v1293, 0.0
    %1298 = vadd.xlane.f32.xlu0 %v1297
    %v1299 = vpop.xlane.xlu0 %1298
    %v1300 = vmul.f32 %v1296, %v45
    %v1301 = vmul.f32 %v1299, %v45
    %v1302 = vadd.f32 %v1300, 1e-12
    %v1303 = vadd.f32 %v1301, 1e-12
    %v1304 = vrsqrt.pop %v1302
    %v1305 = vrsqrt.pop %v1303
    %v1306 = vmul.f32 %v1290, %v1304
    %v1307 = vmul.f32 %v1291, %v1305
    %v1308 = vlaneseq
    %v1309 = vshrl.u32 %v1308, 7
    %v1310 = vsub.s32 0, %v1309
    %v1311 = vrot.slane %v1280, %v1310
    %v1312 = vmul.f32 %v1306, %v1311
    %v1313 = vmul.f32 %v1307, %v1311
    %v1314 = vlaneseq
    %v1315 = vshrl.u32 %v1314, 7
    %v1316 = vsub.s32 0, %v1315
    %v1317 = vrot.slane %v1281, %v1316
    %v1318 = vadd.f32 %v1312, %v1317
    %v1319 = vadd.f32 %v1313, %v1317
    %v1320 = vld [vmem:[#allocation2 + $0x130] sm:$0xff]
    %v1321 = vld [vmem:[#allocation2 + $0x138] sm:$0xff]
    %v1322 = vld [vmem:[#allocation2 + $0x140] sm:$0xff]
    %v1323 = vld [vmem:[#allocation2 + $0x148] sm:$0xff]
    %v1324 = vld [vmem:[#allocation2 + $0x194] sm:$0x1]
    %v1325 = vlaneseq
    %v1326 = vshrl.u32 %v1325, 7
    %v1327 = vsub.s32 0, %v1326
    %v1328 = vrot.slane %v1324, %v1327
    %v1330 = vsel %vm38, %v1318, 0
    %v1333 = vsel %vm38, %v1319, 0
    %1335 = vmatprep.subr.mxu0 0.0
    %1336 = vmatpush1.msra.mxu0 %v1320
    %1337 = vmatprep.subr.mxu0 0.0
    %1338 = vmatpush1.msra.mxu0 %v1321
    %1339 = vmatprep.subr.mxu0 0.0
    %1340 = vmatpush1.msra.mxu0 %v1322
    %1341 = vmatprep.subr.mxu0 0.0
    %1342 = vmatpush1.msra.mxu0 %v1323
    %1343 = vmatprep.subr.mxu0 0.0
    %1344 = vmatpush1.msra.mxu0 0.0
    %1345 = vmatprep.subr.mxu0 0.0
    %1346 = vmatpush1.msra.mxu0 0.0
    %1347 = vmatprep.subr.mxu0 0.0
    %1348 = vmatpush1.msra.mxu0 0.0
    %1349 = vmatprep.subr.mxu0 0.0
    %1350 = vmatpush1.msra.mxu0 0.0
    %1351 = vmatprep.subr.mxu0 0.0
    %1352 = vmatpush1.msra.mxu0 0.0
    %1353 = vmatprep.subr.mxu0 0.0
    %1354 = vmatpush1.msra.mxu0 0.0
    %1355 = vmatprep.subr.mxu0 0.0
    %1356 = vmatpush1.msra.mxu0 0.0
    %1357 = vmatprep.subr.mxu0 0.0
    %1358 = vmatpush1.msra.mxu0 0.0
    %1359 = vmatprep.subr.mxu0 0.0
    %1360 = vmatpush1.msra.mxu0 0.0
    %1361 = vmatprep.subr.mxu0 0.0
    %1362 = vmatpush1.msra.mxu0 0.0
    %1363 = vmatprep.subr.mxu0 0.0
    %1364 = vmatpush1.msra.mxu0 0.0
    %1365 = vmatprep.subr.mxu0 0.0
    %1366 = vmatpush1.msra.mxu0 0.0
    %1367 = vmatprep.subr.mxu0 0.0
    %1368 = vmatpush1.msra.mxu0 0.0
    %1369 = vmatprep.subr.mxu0 0.0
    %1370 = vmatpush1.msra.mxu0 0.0
    %1371 = vmatprep.subr.mxu0 0.0
    %1372 = vmatpush1.msra.mxu0 0.0
    %1373 = vmatprep.subr.mxu0 0.0
    %1374 = vmatpush1.msra.mxu0 0.0
    %1375 = vmatprep.subr.mxu0 0.0
    %1376 = vmatpush1.msra.mxu0 0.0
    %1377 = vmatprep.subr.mxu0 0.0
    %1378 = vmatpush1.msra.mxu0 0.0
    %1379 = vmatprep.subr.mxu0 0.0
    %1380 = vmatpush1.msra.mxu0 0.0
    %1381 = vmatprep.subr.mxu0 0.0
    %1382 = vmatpush1.msra.mxu0 0.0
    %1383 = vmatprep.subr.mxu0 0.0
    %1384 = vmatpush1.msra.mxu0 0.0
    %1385 = vmatprep.subr.mxu0 0.0
    %1386 = vmatpush1.msra.mxu0 0.0
    %1387 = vmatprep.subr.mxu0 0.0
    %1388 = vmatpush1.msra.mxu0 0.0
    %1389 = vmatprep.subr.mxu0 0.0
    %1390 = vmatpush1.msra.mxu0 0.0
    %1391 = vmatprep.subr.mxu0 0.0
    %1392 = vmatpush1.msra.mxu0 0.0
    %1393 = vmatprep.subr.mxu0 0.0
    %1394 = vmatpush1.msra.mxu0 0.0
    %1395 = vmatprep.subr.mxu0 0.0
    %1396 = vmatpush1.msra.mxu0 0.0
    %1397 = vmatprep.subr.mxu0 0.0
    %1398 = vmatpush1.msra.mxu0 0.0
    %1399 = vmatprep.mubr.f32.mxu0 0.0
    %1400 = vmatmul.mubr.f32.gmra.mrb[0].mxu0 %v1330
    %v1401 = vpop.f32.mrb[0].mxu0
    %v1402 = vadd.f32 %v1328, %v1401
    %v1403 = vpop.f32.mrb[0].mxu0
    %1404 = vmatprep.mubr.f32.mxu0 0.0
    %1405 = vmatmul.mubr.f32.gmra.mrb[0].mxu0 %v1333
    %v1406 = vpop.f32.mrb[0].mxu0
    %v1407 = vadd.f32 %v1328, %v1406
    %v1408 = vpop.f32.mrb[0].mxu0
    %1409 = vdwg.mxu0
    %v1410 = vmul.f32 %v1402, 0.5
    %v1411 = vmul.f32 %v1407, 0.5
    %v1412 = vmul.f32 %v1402, 0.044715
    %v1413 = vmul.f32 %v1407, 0.044715
    %v1414 = vmul.f32 %v1412, %v1402
    %v1415 = vmul.f32 %v1413, %v1407
    %v1416 = vmul.f32 %v1414, %v1402
    %v1417 = vmul.f32 %v1415, %v1407
    %v1418 = vadd.f32 %v1402, %v1416
    %v1419 = vadd.f32 %v1407, %v1417
    %v1420 = vmul.f32 %v1418, 0.7978846
    %v1421 = vmul.f32 %v1419, 0.7978846
    %v1422 = vtanh.pop %v1420
    %v1423 = vtanh.pop %v1421
    %v1424 = vadd.f32 %v1422, 1.0
    %v1425 = vadd.f32 %v1423, 1.0
    %v1426 = vmul.f32 %v1410, %v1424
    %v1427 = vmul.f32 %v1411, %v1425
    %v1428 = vld [vmem:[#allocation2 + $0x150] sm:$0xff]
    %v1429 = vld [vmem:[#allocation2 + $0x158] sm:$0xff]
    %v1430 = vld [vmem:[#allocation2 + $0x160] sm:$0xff]
    %v1431 = vld [vmem:[#allocation2 + $0x168] sm:$0xff]
    %v1432 = vld [vmem:[#allocation2 + $0x170] sm:$0xff]
    %v1433 = vld [vmem:[#allocation2 + $0x178] sm:$0xff]
    %v1434 = vld [vmem:[#allocation2 + $0x180] sm:$0xff]
    %v1435 = vld [vmem:[#allocation2 + $0x188] sm:$0xff]
    %v1436 = vld [vmem:[#allocation2 + $0x195] sm:$0x1]
    %v1437 = vlaneseq
    %v1438 = vshrl.u32 %v1437, 7
    %v1439 = vsub.s32 0, %v1438
    %v1440 = vrot.slane %v1436, %v1439
    %v1442 = vsel %vm702, %v1426, 0
    %v1445 = vsel %vm702, %v1427, 0
    %1447 = vmatprep.subr.mxu0 0.0
    %1448 = vmatpush1.msra.mxu0 %v1428
    %1449 = vmatprep.subr.mxu0 0.0
    %1450 = vmatpush1.msra.mxu0 %v1429
    %1451 = vmatprep.subr.mxu0 0.0
    %1452 = vmatpush1.msra.mxu0 %v1430
    %1453 = vmatprep.subr.mxu0 0.0
    %1454 = vmatpush1.msra.mxu0 %v1431
    %1455 = vmatprep.subr.mxu0 0.0
    %1456 = vmatpush1.msra.mxu0 %v1432
    %1457 = vmatprep.subr.mxu0 0.0
    %1458 = vmatpush1.msra.mxu0 %v1433
    %1459 = vmatprep.subr.mxu0 0.0
    %1460 = vmatpush1.msra.mxu0 %v1434
    %1461 = vmatprep.subr.mxu0 0.0
    %1462 = vmatpush1.msra.mxu0 %v1435
    %1463 = vmatprep.subr.mxu0 0.0
    %1464 = vmatpush1.msra.mxu0 0.0
    %1465 = vmatprep.subr.mxu0 0.0
    %1466 = vmatpush1.msra.mxu0 0.0
    %1467 = vmatprep.subr.mxu0 0.0
    %1468 = vmatpush1.msra.mxu0 0.0
    %1469 = vmatprep.subr.mxu0 0.0
    %1470 = vmatpush1.msra.mxu0 0.0
    %1471 = vmatprep.subr.mxu0 0.0
    %1472 = vmatpush1.msra.mxu0 0.0
    %1473 = vmatprep.subr.mxu0 0.0
    %1474 = vmatpush1.msra.mxu0 0.0
    %1475 = vmatprep.subr.mxu0 0.0
    %1476 = vmatpush1.msra.mxu0 0.0
    %1477 = vmatprep.subr.mxu0 0.0
    %1478 = vmatpush1.msra.mxu0 0.0
    %1479 = vmatprep.subr.mxu0 0.0
    %1480 = vmatpush1.msra.mxu0 0.0
    %1481 = vmatprep.subr.mxu0 0.0
    %1482 = vmatpush1.msra.mxu0 0.0
    %1483 = vmatprep.subr.mxu0 0.0
    %1484 = vmatpush1.msra.mxu0 0.0
    %1485 = vmatprep.subr.mxu0 0.0
    %1486 = vmatpush1.msra.mxu0 0.0
    %1487 = vmatprep.subr.mxu0 0.0
    %1488 = vmatpush1.msra.mxu0 0.0
    %1489 = vmatprep.subr.mxu0 0.0
    %1490 = vmatpush1.msra.mxu0 0.0
    %1491 = vmatprep.subr.mxu0 0.0
    %1492 = vmatpush1.msra.mxu0 0.0
    %1493 = vmatprep.subr.mxu0 0.0
    %1494 = vmatpush1.msra.mxu0 0.0
    %1495 = vmatprep.subr.mxu0 0.0
    %1496 = vmatpush1.msra.mxu0 0.0
    %1497 = vmatprep.subr.mxu0 0.0
    %1498 = vmatpush1.msra.mxu0 0.0
    %1499 = vmatprep.subr.mxu0 0.0
    %1500 = vmatpush1.msra.mxu0 0.0
    %1501 = vmatprep.subr.mxu0 0.0
    %1502 = vmatpush1.msra.mxu0 0.0
    %1503 = vmatprep.subr.mxu0 0.0
    %1504 = vmatpush1.msra.mxu0 0.0
    %1505 = vmatprep.subr.mxu0 0.0
    %1506 = vmatpush1.msra.mxu0 0.0
    %1507 = vmatprep.subr.mxu0 0.0
    %1508 = vmatpush1.msra.mxu0 0.0
    %1509 = vmatprep.subr.mxu0 0.0
    %1510 = vmatpush1.msra.mxu0 0.0
    %1511 = vmatprep.mubr.f32.mxu0 0.0
    %1512 = vmatmul.mubr.f32.gmra.mrb[0].mxu0 %v1442
    %v1513 = vpop.f32.mrb[0].mxu0
    %v1514 = vadd.f32 %v1440, %v1513
    %v1515 = vpop.f32.mrb[0].mxu0
    %1516 = vmatprep.mubr.f32.mxu0 0.0
    %1517 = vmatmul.mubr.f32.gmra.mrb[0].mxu0 %v1445
    %v1518 = vpop.f32.mrb[0].mxu0
    %v1519 = vadd.f32 %v1440, %v1518
    %v1520 = vpop.f32.mrb[0].mxu0
    %1521 = vdwg.mxu0
    %v1522 = vadd.f32 %v1514, %v1318
    %v1523 = vadd.f32 %v1519, %v1319
    %v1524 = vld [vmem:[#allocation2 + $0x196] sm:$0x1]
    %v1525 = vld [vmem:[#allocation2 + $0x197] sm:$0x1]
    %v1526 = vsel %vm38, %v1522, 0.0
    %1527 = vadd.xlane.f32.xlu0 %v1526
    %v1528 = vpop.xlane.xlu0 %1527
    %v1529 = vsel %vm38, %v1523, 0.0
    %1530 = vadd.xlane.f32.xlu0 %v1529
    %v1531 = vpop.xlane.xlu0 %1530
    %v1532 = vmul.f32 %v1528, %v45
    %v1533 = vmul.f32 %v1531, %v45
    %v1534 = vsub.f32 %v1522, %v1532
    %v1535 = vsub.f32 %v1523, %v1533
    %v1536 = vmul.f32 %v1534, %v1534
    %v1537 = vmul.f32 %v1535, %v1535
    %v1538 = vsel %vm38, %v1536, 0.0
    %1539 = vadd.xlane.f32.xlu0 %v1538
    %v1540 = vpop.xlane.xlu0 %1539
    %v1541 = vsel %vm38, %v1537, 0.0
    %1542 = vadd.xlane.f32.xlu0 %v1541
    %v1543 = vpop.xlane.xlu0 %1542
    %v1544 = vmul.f32 %v1540, %v45
    %v1545 = vmul.f32 %v1543, %v45
    %v1546 = vadd.f32 %v1544, 1e-12
    %v1547 = vadd.f32 %v1545, 1e-12
    %v1548 = vrsqrt.pop %v1546
    %v1549 = vrsqrt.pop %v1547
    %v1550 = vmul.f32 %v1534, %v1548
    %v1551 = vmul.f32 %v1535, %v1549
    %v1552 = vlaneseq
    %v1553 = vshrl.u32 %v1552, 7
    %v1554 = vsub.s32 0, %v1553
    %v1555 = vrot.slane %v1524, %v1554
    %v1556 = vmul.f32 %v1550, %v1555
    %v1557 = vmul.f32 %v1551, %v1555
    %v1558 = vlaneseq
    %v1559 = vshrl.u32 %v1558, 7
    %v1560 = vsub.s32 0, %v1559
    %v1561 = vrot.slane %v1525, %v1560
    %v1562 = vadd.f32 %v1556, %v1561
    %v1563 = vadd.f32 %v1557, %v1561
    %v1565 = vrot.slane %v1563, 7
    %vm1567 = vcmask 1040384
    %v1568 = vsel %vm1567, %v1562, %v1565
    %v1569 = vld [vmem:[#allocation2 + $0x8] sm:$0xff]
    %v1570 = vld [vmem:[#allocation2 + $0x10] sm:$0xff]
    %v1571 = vld [vmem:[#allocation2 + $0x18] sm:$0xff]
    %v1572 = vld [vmem:[#allocation2 + $0x20] sm:$0xff]
    %v1573 = vld [vmem:[#allocation2 + $0x2] sm:$0x1]
    %v1574 = vlaneseq
    %v1575 = vshrl.u32 %v1574, 7
    %v1576 = vsub.s32 0, %v1575
    %v1577 = vrot.slane %v1573, %v1576
    %v1579 = vsel %vm38, %v1568, 0
    %1581 = vmatprep.subr.mxu0 0.0
    %1582 = vmatpush1.msra.mxu0 %v1569
    %1583 = vmatprep.subr.mxu0 0.0
    %1584 = vmatpush1.msra.mxu0 %v1570
    %1585 = vmatprep.subr.mxu0 0.0
    %1586 = vmatpush1.msra.mxu0 %v1571
    %1587 = vmatprep.subr.mxu0 0.0
    %1588 = vmatpush1.msra.mxu0 %v1572
    %1589 = vmatprep.subr.mxu0 0.0
    %1590 = vmatpush1.msra.mxu0 0.0
    %1591 = vmatprep.subr.mxu0 0.0
    %1592 = vmatpush1.msra.mxu0 0.0
    %1593 = vmatprep.subr.mxu0 0.0
    %1594 = vmatpush1.msra.mxu0 0.0
    %1595 = vmatprep.subr.mxu0 0.0
    %1596 = vmatpush1.msra.mxu0 0.0
    %1597 = vmatprep.subr.mxu0 0.0
    %1598 = vmatpush1.msra.mxu0 0.0
    %1599 = vmatprep.subr.mxu0 0.0
    %1600 = vmatpush1.msra.mxu0 0.0
    %1601 = vmatprep.subr.mxu0 0.0
    %1602 = vmatpush1.msra.mxu0 0.0
    %1603 = vmatprep.subr.mxu0 0.0
    %1604 = vmatpush1.msra.mxu0 0.0
    %1605 = vmatprep.subr.mxu0 0.0
    %1606 = vmatpush1.msra.mxu0 0.0
    %1607 = vmatprep.subr.mxu0 0.0
    %1608 = vmatpush1.msra.mxu0 0.0
    %1609 = vmatprep.subr.mxu0 0.0
    %1610 = vmatpush1.msra.mxu0 0.0
    %1611 = vmatprep.subr.mxu0 0.0
    %1612 = vmatpush1.msra.mxu0 0.0
    %1613 = vmatprep.subr.mxu0 0.0
    %1614 = vmatpush1.msra.mxu0 0.0
    %1615 = vmatprep.subr.mxu0 0.0
    %1616 = vmatpush1.msra.mxu0 0.0
    %1617 = vmatprep.subr.mxu0 0.0
    %1618 = vmatpush1.msra.mxu0 0.0
    %1619 = vmatprep.subr.mxu0 0.0
    %1620 = vmatpush1.msra.mxu0 0.0
    %1621 = vmatprep.subr.mxu0 0.0
    %1622 = vmatpush1.msra.mxu0 0.0
    %1623 = vmatprep.subr.mxu0 0.0
    %1624 = vmatpush1.msra.mxu0 0.0
    %1625 = vmatprep.subr.mxu0 0.0
    %1626 = vmatpush1.msra.mxu0 0.0
    %1627 = vmatprep.subr.mxu0 0.0
    %1628 = vmatpush1.msra.mxu0 0.0
    %1629 = vmatprep.subr.mxu0 0.0
    %1630 = vmatpush1.msra.mxu0 0.0
    %1631 = vmatprep.subr.mxu0 0.0
    %1632 = vmatpush1.msra.mxu0 0.0
    %1633 = vmatprep.subr.mxu0 0.0
    %1634 = vmatpush1.msra.mxu0 0.0
    %1635 = vmatprep.subr.mxu0 0.0
    %1636 = vmatpush1.msra.mxu0 0.0
    %1637 = vmatprep.subr.mxu0 0.0
    %1638 = vmatpush1.msra.mxu0 0.0
    %1639 = vmatprep.subr.mxu0 0.0
    %1640 = vmatpush1.msra.mxu0 0.0
    %1641 = vmatprep.subr.mxu0 0.0
    %1642 = vmatpush1.msra.mxu0 0.0
    %1643 = vmatprep.subr.mxu0 0.0
    %1644 = vmatpush1.msra.mxu0 0.0
    %1645 = vmatprep.mubr.f32.mxu0 0.0
    %1646 = vmatmul.mubr.f32.gmra.mrb[0].mxu0 %v1579
    %v1647 = vpop.f32.mrb[0].mxu0
    %v1648 = vadd.f32 %v1577, %v1647
    %v1649 = vpop.f32.mrb[0].mxu0
    %1650 = vdwg.mxu0
    %v1651 = vtanh.pop %v1648
    %v1652 = vld [vmem:[#allocation2 + $0x28] sm:$0xff]
    %v1653 = vld [vmem:[#allocation2 + $0x30] sm:$0xff]
    %v1654 = vld [vmem:[#allocation2 + $0x38] sm:$0xff]
    %v1655 = vld [vmem:[#allocation2 + $0x40] sm:$0xff]
    %v1656 = vld [vmem:[#allocation2 + $0x3] sm:$0x1]
    %v1657 = vlaneseq
    %v1658 = vshrl.u32 %v1657, 7
    %v1659 = vsub.s32 0, %v1658
    %v1660 = vrot.slane %v1656, %v1659
    %v1662 = vsel %vm38, %v1651, 0
    %1664 = vmatprep.subr.mxu0 0.0
    %1665 = vmatpush1.msra.mxu0 %v1652
    %1666 = vmatprep.subr.mxu0 0.0
    %1667 = vmatpush1.msra.mxu0 %v1653
    %1668 = vmatprep.subr.mxu0 0.0
    %1669 = vmatpush1.msra.mxu0 %v1654
    %1670 = vmatprep.subr.mxu0 0.0
    %1671 = vmatpush1.msra.mxu0 %v1655
    %1672 = vmatprep.subr.mxu0 0.0
    %1673 = vmatpush1.msra.mxu0 0.0
    %1674 = vmatprep.subr.mxu0 0.0
    %1675 = vmatpush1.msra.mxu0 0.0
    %1676 = vmatprep.subr.mxu0 0.0
    %1677 = vmatpush1.msra.mxu0 0.0
    %1678 = vmatprep.subr.mxu0 0.0
    %1679 = vmatpush1.msra.mxu0 0.0
    %1680 = vmatprep.subr.mxu0 0.0
    %1681 = vmatpush1.msra.mxu0 0.0
    %1682 = vmatprep.subr.mxu0 0.0
    %1683 = vmatpush1.msra.mxu0 0.0
    %1684 = vmatprep.subr.mxu0 0.0
    %1685 = vmatpush1.msra.mxu0 0.0
    %1686 = vmatprep.subr.mxu0 0.0
    %1687 = vmatpush1.msra.mxu0 0.0
    %1688 = vmatprep.subr.mxu0 0.0
    %1689 = vmatpush1.msra.mxu0 0.0
    %1690 = vmatprep.subr.mxu0 0.0
    %1691 = vmatpush1.msra.mxu0 0.0
    %1692 = vmatprep.subr.mxu0 0.0
    %1693 = vmatpush1.msra.mxu0 0.0
    %1694 = vmatprep.subr.mxu0 0.0
    %1695 = vmatpush1.msra.mxu0 0.0
    %1696 = vmatprep.subr.mxu0 0.0
    %1697 = vmatpush1.msra.mxu0 0.0
    %1698 = vmatprep.subr.mxu0 0.0
    %1699 = vmatpush1.msra.mxu0 0.0
    %1700 = vmatprep.subr.mxu0 0.0
    %1701 = vmatpush1.msra.mxu0 0.0
    %1702 = vmatprep.subr.mxu0 0.0
    %1703 = vmatpush1.msra.mxu0 0.0
    %1704 = vmatprep.subr.mxu0 0.0
    %1705 = vmatpush1.msra.mxu0 0.0
    %1706 = vmatprep.subr.mxu0 0.0
    %1707 = vmatpush1.msra.mxu0 0.0
    %1708 = vmatprep.subr.mxu0 0.0
    %1709 = vmatpush1.msra.mxu0 0.0
    %1710 = vmatprep.subr.mxu0 0.0
    %1711 = vmatpush1.msra.mxu0 0.0
    %1712 = vmatprep.subr.mxu0 0.0
    %1713 = vmatpush1.msra.mxu0 0.0
    %1714 = vmatprep.subr.mxu0 0.0
    %1715 = vmatpush1.msra.mxu0 0.0
    %1716 = vmatprep.subr.mxu0 0.0
    %1717 = vmatpush1.msra.mxu0 0.0
    %1718 = vmatprep.subr.mxu0 0.0
    %1719 = vmatpush1.msra.mxu0 0.0
    %1720 = vmatprep.subr.mxu0 0.0
    %1721 = vmatpush1.msra.mxu0 0.0
    %1722 = vmatprep.subr.mxu0 0.0
    %1723 = vmatpush1.msra.mxu0 0.0
    %1724 = vmatprep.subr.mxu0 0.0
    %1725 = vmatpush1.msra.mxu0 0.0
    %1726 = vmatprep.subr.mxu0 0.0
    %1727 = vmatpush1.msra.mxu0 0.0
    %1728 = vmatprep.mubr.f32.mxu0 0.0
    %1729 = vmatmul.mubr.f32.gmra.mrb[0].mxu0 %v1662
    %v1730 = vpop.f32.mrb[0].mxu0
    %v1731 = vadd.f32 %v1660, %v1730
    %v1732 = vpop.f32.mrb[0].mxu0
    %1733 = vdwg.mxu0
    %vm1734 = vcmask 9216
    %1735 = vst.msk [vmem:[%s3] sm:$0x3] %vm1734, %v1731
    // Predicated region
    $region18: #{multitask_bert_forward.1} parent=1 // pred_check
      _
    $region19: #{multitask_bert_forward.1} parent=1 // pred_check_branch
      %1737 = sbr.rel (0) target = $region21
    $region20: #{multitask_bert_forward.1} parent=1 // pred_region
      _
    $region21: #{multitask_bert_forward.1} parent=1 // pred_fallthru
      _
    // Predicated region
    $region22: #{multitask_bert_forward.1} parent=1 // pred_check
      _
    $region23: #{multitask_bert_forward.1} parent=1 // pred_check_branch
      %1739 = sbr.rel (0) target = $region25
    $region24: #{multitask_bert_forward.1} parent=1 // pred_region
      _
    $region25: #{multitask_bert_forward.1} parent=1 // pred_fallthru
      _
    %1740 = vsyncpa [#allocation3], 1

</llo_original>
